<compile_context>
chip_gen: v7x
topology: tpu7x:2x2x1
jax: 0.10.0
libtpu: 0.0.40
codegen_flags: <defaults>
</compile_context>

<pallas_src>
import functools

import jax
import jax.numpy as jnp
from jax import lax
from jax.experimental import pallas as pl
from jax.experimental.pallas import tpu as pltpu


# ----------------------------- in-kernel math ------------------------------

def _layer_norm(x, gamma, beta, eps=1e-6):
    # UER LayerNorm: gamma * (x - mean) / (std + eps) + beta, std with N-1.
    # Exact reciprocal (not approx) for torch parity.
    mean = jnp.mean(x, axis=-1, keepdims=True)
    diff = x - mean
    var = jnp.sum(diff * diff, axis=-1, keepdims=True) * (1.0 / (x.shape[-1] - 1))
    inv = 1.0 / (jnp.sqrt(var) + eps)
    return gamma * (diff * inv) + beta


def _gelu(x):
    # Exact (erf-form) GELU, matching UER's gelu.
    return 0.5 * x * (1.0 + lax.erf(x * 0.7071067811865476))


def _encoder_kernel(x_ref, mask_ref, wqkv_ref, bqkv_ref, wo_ref,
                    w1_ref, b1_ref, w2_ref, vec_ref,
                    out_ref, qkv_scr, ctx_scr, *, heads):
    # NOTE: the residual carry below is only correct because the layer axis is
    # the innermost grid axis and is marked "arbitrary"; do not reorder.
    layer = pl.program_id(1)

    # Residual stream is carried in out_ref (f32 output dtype == compute dtype).
    # Its block index is constant across the layer axis, so the block stays
    # resident in VMEM and is written back to HBM only when the batch block
    # changes / the grid ends.
    @pl.when(layer == 0)
    def _():
        out_ref[...] = x_ref[...].astype(out_ref.dtype)

    x = out_ref[...].astype(jnp.float32)           # (Bb, L, H) residual stream
    Bb, L, H = x.shape
    dh = H // heads
    scale = 1.0 / jnp.sqrt(jnp.float32(dh))
    m = mask_ref[...].astype(jnp.float32)          # (Bb, 1, L) additive key mask

    # Packed per-layer vectors: [bo, gamma1, beta1, b2, gamma2, beta2, 0, 0].
    vecs = vec_ref[0].astype(jnp.float32)          # (8, H)
    bo, g1, be1 = vecs[0:1], vecs[1:2], vecs[2:3]
    b2, g2, be2 = vecs[3:4], vecs[4:5], vecs[5:6]

    # ---- fused QKV projection: one (Bb*L, H) @ (H, 3H) MXU op, bf16/f32-acc.
    xf = x.reshape(Bb * L, H)
    qkv = jnp.dot(xf.astype(jnp.bfloat16), wqkv_ref[0],
                  preferred_element_type=jnp.float32)
    qkv = qkv + bqkv_ref[0].astype(jnp.float32)    # (Bb*L, 3H)
    qkv_scr[...] = qkv.reshape(Bb, L, 3 * H).astype(jnp.bfloat16)

    # ---- multi-head attention.  Each head's context goes into its lane slot
    # of ctx_scr; the output projection then runs as a single K=H matmul.
    # TODO(synk): switch to a fori_loop + key-tiled online softmax for large
    # head counts / long sequences.
    for h in range(heads):
        sl = slice(h * dh, (h + 1) * dh)
        q_h = qkv_scr[:, :, sl]                                   # (Bb, L, dh)
        k_h = qkv_scr[:, :, H + h * dh:H + (h + 1) * dh]
        v_h = qkv_scr[:, :, 2 * H + h * dh:2 * H + (h + 1) * dh]
        s = jnp.einsum('bqd,bkd->bqk', q_h, k_h,
                       preferred_element_type=jnp.float32) * scale
        s = s + m                                                 # key mask
        s = s - jnp.max(s, axis=-1, keepdims=True)
        p = jnp.exp(s)
        p = p * pl.reciprocal(jnp.sum(p, axis=-1, keepdims=True), approx=True)
        ctx = jnp.einsum('bqk,bkd->bqd', p.astype(jnp.bfloat16), v_h,
                         preferred_element_type=jnp.float32)      # (Bb, L, dh)
        ctx_scr[:, :, sl] = ctx.astype(jnp.bfloat16)

    attn = jnp.dot(ctx_scr[...].reshape(Bb * L, H), wo_ref[0],
                   preferred_element_type=jnp.float32) + bo

    # ---- post-LN transformer layer: LN(attn + x), GELU FFN, LN(ffn + inter).
    inter = _layer_norm(attn + xf, g1, be1)
    ff = jnp.dot(inter.astype(jnp.bfloat16), w1_ref[0],
                 preferred_element_type=jnp.float32)
    ff = _gelu(ff + b1_ref[0].astype(jnp.float32))
    ff = jnp.dot(ff.astype(jnp.bfloat16), w2_ref[0],
                 preferred_element_type=jnp.float32) + b2
    out = _layer_norm(ff + inter, g2, be2)

    out_ref[...] = out.reshape(Bb, L, H).astype(out_ref.dtype)


# ------------------------------ pallas wrapper ------------------------------

def _vmem_limit_bytes():
    try:
        cap = getattr(pltpu.get_tpu_info(), "vmem_capacity_bytes",
                      64 * 1024 * 1024)
    except Exception:
        cap = 64 * 1024 * 1024
    return max(32 * 1024 * 1024, int(cap * 0.8))


def transformer_encoder_forward(emb, seg, params, heads, block_b=None):
    """emb: [B, L, H] float32, seg: [B, L] int32 -> [B, L, H] float32."""
    B, L, H = emb.shape
    NL = params["wqkv"].shape[0]
    FF = params["w1"].shape[-1]

    # Batch-block size: fold batch rows to amortize per-layer weight DMA while
    # keeping >= 2 blocks on the "parallel" axis when possible (v7x dual-TC).
    if block_b is None:
        block_b = B // 2 if (B % 2 == 0 and B >= 2) else B
    assert B % block_b == 0, "block_b must divide batch size"
    grid_b = B // block_b

    # fully_visible mask depends only on the key position: (1 - (seg>0))*-1e4.
    mask = ((1.0 - (seg > 0).astype(jnp.float32)) * -10000.0)[:, None, :]

    def io_map(b, l):
        return (b, 0, 0)

    def layer_map(b, l):
        return (l, 0, 0)

    in_specs = [
        pl.BlockSpec((block_b, L, H), io_map),       # emb
        pl.BlockSpec((block_b, 1, L), io_map),       # additive key mask
        pl.BlockSpec((1, H, 3 * H), layer_map),      # fused Wqkv
        pl.BlockSpec((1, 1, 3 * H), layer_map),      # fused bqkv
        pl.BlockSpec((1, H, H), layer_map),          # Wo
        pl.BlockSpec((1, H, FF), layer_map),         # W1
        pl.BlockSpec((1, 1, FF), layer_map),         # b1
        pl.BlockSpec((1, FF, H), layer_map),         # W2
        pl.BlockSpec((1, 8, H), layer_map),          # packed [bo,g1,be1,b2,g2,be2,0,0]
    ]
    out_spec = pl.BlockSpec((block_b, L, H), io_map)

    kernel = functools.partial(_encoder_kernel, heads=heads)
    return pl.pallas_call(
        kernel,
        out_shape=jax.ShapeDtypeStruct((B, L, H), emb.dtype),
        grid=(grid_b, NL),                           # layer axis MUST stay innermost
        in_specs=in_specs,
        out_specs=out_spec,
        scratch_shapes=[
            pltpu.VMEM((block_b, L, 3 * H), jnp.bfloat16),   # staged QKV
            pltpu.VMEM((block_b, L, H), jnp.bfloat16),       # per-head contexts
        ],
        compiler_params=pltpu.CompilerParams(
            dimension_semantics=("parallel", "arbitrary"),
            vmem_limit_bytes=_vmem_limit_bytes()),
    )(emb, mask, params["wqkv"], params["bqkv"], params["wo"],
      params["w1"], params["b1"], params["w2"], params["vecs"])


# ------------------------------ parameters ---------------------------------

def init_params(key, layers_num, hidden, ff, dtype=jnp.bfloat16):
    """Per-layer weights stacked on a leading layer axis, stored in bf16.
    Linear weights are [in_features, out_features] (transpose of torch)."""
    H, FF, NL = hidden, ff, layers_num

    def w(k, shape, scale=0.02):
        return (scale * jax.random.normal(k, shape, dtype=jnp.float32)).astype(dtype)

    ks = jax.random.split(key, 12)
    wqkv = w(ks[0], (NL, H, 3 * H))
    bqkv = w(ks[1], (NL, 1, 3 * H))
    wo = w(ks[2], (NL, H, H))
    bo = w(ks[3], (NL, 1, H))
    w1 = w(ks[4], (NL, H, FF))
    b1 = w(ks[5], (NL, 1, FF))
    w2 = w(ks[6], (NL, FF, H))
    b2 = w(ks[7], (NL, 1, H))
    g1 = (1.0 + 0.1 * jax.random.normal(ks[8], (NL, 1, H))).astype(dtype)
    be1 = w(ks[9], (NL, 1, H), 0.1)
    g2 = (1.0 + 0.1 * jax.random.normal(ks[10], (NL, 1, H))).astype(dtype)
    be2 = w(ks[11], (NL, 1, H), 0.1)
    zero = jnp.zeros((NL, 1, H), dtype)
    vecs = jnp.concatenate([bo, g1, be1, b2, g2, be2, zero, zero], axis=1)  # (NL,8,H)
    return dict(wqkv=wqkv, bqkv=bqkv, wo=wo, w1=w1, b1=b1, w2=w2, vecs=vecs)


# --------------------------- pure-JAX reference -----------------------------

def _ref_ln(x, gamma, beta, eps=1e-6):
    mean = jnp.mean(x, axis=-1, keepdims=True)
    diff = x - mean
    var = jnp.sum(diff * diff, axis=-1, keepdims=True) / (x.shape[-1] - 1)
    return gamma * diff / (jnp.sqrt(var) + eps) + beta


def _ref_encoder(emb, seg, params, heads):
    f32 = jnp.float32
    B, L, H = emb.shape
    dh = H // heads
    mask = ((1.0 - (seg > 0).astype(f32)) * -10000.0)[:, None, None, :]
    NL = params["wqkv"].shape[0]
    h_act = emb
    for i in range(NL):
        wqkv = params["wqkv"][i].astype(f32)
        bqkv = params["bqkv"][i, 0].astype(f32)
        wo = params["wo"][i].astype(f32)
        w1 = params["w1"][i].astype(f32)
        b1 = params["b1"][i, 0].astype(f32)
        w2 = params["w2"][i].astype(f32)
        vec = params["vecs"][i].astype(f32)
        bo, g1, be1, b2, g2, be2 = vec[0], vec[1], vec[2], vec[3], vec[4], vec[5]

        qkv = h_act @ wqkv + bqkv
        q, k, v = qkv[..., :H], qkv[..., H:2 * H], qkv[..., 2 * H:]
        qh = q.reshape(B, L, heads, dh).transpose(0, 2, 1, 3)
        kh = k.reshape(B, L, heads, dh).transpose(0, 2, 1, 3)
        vh = v.reshape(B, L, heads, dh).transpose(0, 2, 1, 3)
        s = jnp.einsum('bhqd,bhkd->bhqk', qh, kh) / jnp.sqrt(float(dh)) + mask
        p = jax.nn.softmax(s, axis=-1)
        ctx = jnp.einsum('bhqk,bhkd->bhqd', p, vh).transpose(0, 2, 1, 3).reshape(B, L, H)
        attn = ctx @ wo + bo
        inter = _ref_ln(attn + h_act, g1, be1)
        ff = jax.nn.gelu(inter @ w1 + b1, approximate=False)
        ff = ff @ w2 + b2
        h_act = _ref_ln(ff + inter, g2, be2)
    return h_act


# ----------------------------------- main -----------------------------------

if __name__ == "__main__":
    B, L, H, HEADS, FF, LAYERS = 2, 8, 32, 4, 64, 2

    key = jax.random.PRNGKey(0)
    k_emb, k_par = jax.random.split(key)
    emb = jax.random.normal(k_emb, (B, L, H), dtype=jnp.float32)
    # seg: batch 0 fully valid, batch 1 has two padding tokens at the end.
    seg = jnp.array([[1, 1, 1, 1, 1, 1, 1, 1],
                     [1, 1, 1, 1, 1, 1, 0, 0]], dtype=jnp.int32)

    params = init_params(k_par, LAYERS, H, FF)

    out = transformer_encoder_forward(emb, seg, params, HEADS)
    out = jax.block_until_ready(out)

    ref = _ref_encoder(emb, seg, params, HEADS)
    assert out.shape == (B, L, H)
    err = float(jnp.max(jnp.abs(out - ref)))
    # bf16 matmul inputs vs f32 reference -> loosened tolerance.
    assert err < 3e-2, err

    print("KERNEL_OK")
</pallas_src>

<mosaic_0001>
module attributes {stable_mosaic.version = 11 : i64} {
  func.func @_encoder_kernel(%arg0: i32, %arg1: i32, %arg2: memref<1x8x32xf32, #tpu.memory_space<vmem>>, %arg3: memref<1x1x8xf32, #tpu.memory_space<vmem>>, %arg4: memref<1x32x96xbf16, #tpu.memory_space<vmem>>, %arg5: memref<1x1x96xbf16, #tpu.memory_space<vmem>>, %arg6: memref<1x32x32xbf16, #tpu.memory_space<vmem>>, %arg7: memref<1x32x64xbf16, #tpu.memory_space<vmem>>, %arg8: memref<1x1x64xbf16, #tpu.memory_space<vmem>>, %arg9: memref<1x64x32xbf16, #tpu.memory_space<vmem>>, %arg10: memref<1x8x32xbf16, #tpu.memory_space<vmem>>, %arg11: memref<1x8x32xf32, #tpu.memory_space<vmem>>, %arg12: memref<1x8x96xbf16, #tpu.memory_space<vmem>>, %arg13: memref<1x8x32xbf16, #tpu.memory_space<vmem>>) attributes {dimension_semantics = [#tpu.dimension_semantics<parallel>, #tpu.dimension_semantics<arbitrary>], iteration_bounds = array<i64: 2, 2>, scalar_prefetch = 0 : i64, scratch_operands = 2 : i64, tpu.core_type = #tpu.core_type<tc>, window_params = [{transform_indices = @transform_0, window_bounds = array<i64: 1, 8, 32>}, {transform_indices = @transform_1, window_bounds = array<i64: 1, 1, 8>}, {transform_indices = @transform_2, window_bounds = array<i64: 1, 32, 96>}, {transform_indices = @transform_3, window_bounds = array<i64: 1, 1, 96>}, {transform_indices = @transform_4, window_bounds = array<i64: 1, 32, 32>}, {transform_indices = @transform_5, window_bounds = array<i64: 1, 32, 64>}, {transform_indices = @transform_6, window_bounds = array<i64: 1, 1, 64>}, {transform_indices = @transform_7, window_bounds = array<i64: 1, 64, 32>}, {transform_indices = @transform_8, window_bounds = array<i64: 1, 8, 32>}, {transform_indices = @transform_9, window_bounds = array<i64: 1, 8, 32>}]} {
    %c0_i32 = arith.constant 0 : i32
    %0 = arith.cmpi eq, %arg1, %c0_i32 : i32
    %1 = arith.extui %0 : i1 to i32
    %c0_i32_0 = arith.constant 0 : i32
    %2 = arith.cmpi ne, %1, %c0_i32_0 : i32
    scf.if %2 {
      %c0_109 = arith.constant 0 : index
      %c0_110 = arith.constant 0 : index
      %c0_111 = arith.constant 0 : index
      %195 = vector.load %arg2[%c0_109, %c0_110, %c0_111] : memref<1x8x32xf32, #tpu.memory_space<vmem>>, vector<1x8x32xf32>
      %c0_112 = arith.constant 0 : index
      %c0_113 = arith.constant 0 : index
      %c0_114 = arith.constant 0 : index
      %196 = vector.load %arg11[%c0_112, %c0_113, %c0_114] : memref<1x8x32xf32, #tpu.memory_space<vmem>>, vector<1x8x32xf32>
      tpu.vector_store %arg11[%c0_112, %c0_113, %c0_114], %195 {strides = array<i32>} : memref<1x8x32xf32, #tpu.memory_space<vmem>>, vector<1x8x32xf32>,
    } else {
    }
    %c0 = arith.constant 0 : index
    %c0_1 = arith.constant 0 : index
    %c0_2 = arith.constant 0 : index
    %3 = vector.load %arg11[%c0, %c0_1, %c0_2] : memref<1x8x32xf32, #tpu.memory_space<vmem>>, vector<1x8x32xf32>
    %cst = arith.constant 8.000000e+00 : f32
    %4 = math.sqrt %cst : f32
    %cst_3 = arith.constant 1.000000e+00 : f32
    %5 = arith.divf %cst_3, %4 : f32
    %c0_4 = arith.constant 0 : index
    %c0_5 = arith.constant 0 : index
    %c0_6 = arith.constant 0 : index
    %6 = vector.load %arg3[%c0_4, %c0_5, %c0_6] : memref<1x1x8xf32, #tpu.memory_space<vmem>>, vector<1x1x8xf32>
    %c0_7 = arith.constant 0 : index
    %c0_8 = arith.constant 0 : index
    %c0_9 = arith.constant 0 : index
    %7 = vector.load %arg10[%c0_7, %c0_8, %c0_9] : memref<1x8x32xbf16, #tpu.memory_space<vmem>>, vector<1x8x32xbf16>
    %8 = vector.shape_cast %7 : vector<1x8x32xbf16> to vector<8x32xbf16>
    %9 = arith.extf %8 : vector<8x32xbf16> to vector<8x32xf32>
    %10 = vector.extract_strided_slice %9 {offsets = [0, 0], sizes = [1, 32], strides = [1, 1]} : vector<8x32xf32> to vector<1x32xf32>
    %11 = vector.extract_strided_slice %9 {offsets = [1, 0], sizes = [1, 32], strides = [1, 1]} : vector<8x32xf32> to vector<1x32xf32>
    %12 = vector.extract_strided_slice %9 {offsets = [2, 0], sizes = [1, 32], strides = [1, 1]} : vector<8x32xf32> to vector<1x32xf32>
    %13 = vector.extract_strided_slice %9 {offsets = [3, 0], sizes = [1, 32], strides = [1, 1]} : vector<8x32xf32> to vector<1x32xf32>
    %14 = vector.extract_strided_slice %9 {offsets = [4, 0], sizes = [1, 32], strides = [1, 1]} : vector<8x32xf32> to vector<1x32xf32>
    %15 = vector.extract_strided_slice %9 {offsets = [5, 0], sizes = [1, 32], strides = [1, 1]} : vector<8x32xf32> to vector<1x32xf32>
    %16 = vector.shape_cast %3 : vector<1x8x32xf32> to vector<8x32xf32>
    %17 = arith.truncf %16 : vector<8x32xf32> to vector<8x32xbf16>
    %c0_10 = arith.constant 0 : index
    %c0_11 = arith.constant 0 : index
    %c0_12 = arith.constant 0 : index
    %18 = vector.load %arg4[%c0_10, %c0_11, %c0_12] : memref<1x32x96xbf16, #tpu.memory_space<vmem>>, vector<1x32x96xbf16>
    %19 = vector.shape_cast %18 : vector<1x32x96xbf16> to vector<32x96xbf16>
    %cst_13 = arith.constant dense<0.000000e+00> : vector<8x96xf32>
    %20 = tpu.matmul %17, %19, %cst_13 {dimension_numbers = #tpu.dot_dimension_numbers<[1], [0], [0], [1], [0, 0, 1, 1], [], []>} : vector<8x32xbf16>, vector<32x96xbf16>, vector<8x96xf32> -> vector<8x96xf32>
    %c0_14 = arith.constant 0 : index
    %c0_15 = arith.constant 0 : index
    %c0_16 = arith.constant 0 : index
    %21 = vector.load %arg5[%c0_14, %c0_15, %c0_16] : memref<1x1x96xbf16, #tpu.memory_space<vmem>>, vector<1x1x96xbf16>
    %22 = vector.shape_cast %21 : vector<1x1x96xbf16> to vector<1x96xbf16>
    %23 = arith.extf %22 : vector<1x96xbf16> to vector<1x96xf32>
    %24 = vector.broadcast %23 : vector<1x96xf32> to vector<8x96xf32>
    %25 = arith.addf %20, %24 : vector<8x96xf32>
    %26 = vector.shape_cast %25 : vector<8x96xf32> to vector<1x8x96xf32>
    %27 = arith.truncf %26 : vector<1x8x96xf32> to vector<1x8x96xbf16>
    %c0_17 = arith.constant 0 : index
    %c0_18 = arith.constant 0 : index
    %c0_19 = arith.constant 0 : index
    %28 = vector.load %arg12[%c0_17, %c0_18, %c0_19] : memref<1x8x96xbf16, #tpu.memory_space<vmem>>, vector<1x8x96xbf16>
    tpu.vector_store %arg12[%c0_17, %c0_18, %c0_19], %27 {strides = array<i32>} : memref<1x8x96xbf16, #tpu.memory_space<vmem>>, vector<1x8x96xbf16>,
    %c0_20 = arith.constant 0 : index
    %c0_21 = arith.constant 0 : index
    %c0_22 = arith.constant 0 : index
    %29 = vector.load %arg12[%c0_20, %c0_21, %c0_22] : memref<1x8x96xbf16, #tpu.memory_space<vmem>>, vector<1x8x8xbf16>
    %c0_23 = arith.constant 0 : index
    %c0_24 = arith.constant 0 : index
    %c32 = arith.constant 32 : index
    %30 = vector.load %arg12[%c0_23, %c0_24, %c32] : memref<1x8x96xbf16, #tpu.memory_space<vmem>>, vector<1x8x8xbf16>
    %c0_25 = arith.constant 0 : index
    %c0_26 = arith.constant 0 : index
    %c64 = arith.constant 64 : index
    %31 = vector.load %arg12[%c0_25, %c0_26, %c64] : memref<1x8x96xbf16, #tpu.memory_space<vmem>>, vector<1x8x8xbf16>
    "tpu.trace_start"() <{level = 10 : i32, message = "bqd,bkd->bqk"}> : () -> ()
    %cst_27 = arith.constant dense<0.000000e+00> : vector<1x8x8xf32>
    %32 = tpu.matmul %29, %30, %cst_27 {dimension_numbers = #tpu.dot_dimension_numbers<[2], [2], [1], [1], [0, 0, 0, 1, 1, 1], [0], [0]>} : vector<1x8x8xbf16>, vector<1x8x8xbf16>, vector<1x8x8xf32> -> vector<1x8x8xf32>
    "tpu.trace_stop"() : () -> ()
    %33 = vector.broadcast %5 : f32 to vector<1x8x8xf32>
    %34 = arith.mulf %32, %33 : vector<1x8x8xf32>
    %35 = vector.broadcast %6 : vector<1x1x8xf32> to vector<1x8x8xf32>
    %36 = arith.addf %34, %35 : vector<1x8x8xf32>
    %cst_28 = arith.constant dense<0xFF800000> : vector<1x8xf32>
    %37 = vector.multi_reduction <maximumf>, %36, %cst_28 [2] : vector<1x8x8xf32> to vector<1x8xf32>
    %38 = vector.shape_cast %37 : vector<1x8xf32> to vector<1x8x1xf32>
    %39 = vector.broadcast %38 : vector<1x8x1xf32> to vector<1x8x8xf32>
    %40 = arith.subf %36, %39 : vector<1x8x8xf32>
    %41 = math.exp %40 : vector<1x8x8xf32>
    %cst_29 = arith.constant dense<0.000000e+00> : vector<1x8xf32>
    %42 = vector.multi_reduction <add>, %41, %cst_29 [2] : vector<1x8x8xf32> to vector<1x8xf32>
    %43 = vector.shape_cast %42 : vector<1x8xf32> to vector<1x8x1xf32>
    %44 = tpu.reciprocal %43 {approx = true} : vector<1x8x1xf32> -> vector<1x8x1xf32>
    %45 = vector.broadcast %44 : vector<1x8x1xf32> to vector<1x8x8xf32>
    %46 = arith.mulf %41, %45 : vector<1x8x8xf32>
    %47 = arith.truncf %46 : vector<1x8x8xf32> to vector<1x8x8xbf16>
    "tpu.trace_start"() <{level = 10 : i32, message = "bqk,bkd->bqd"}> : () -> ()
    %cst_30 = arith.constant dense<0.000000e+00> : vector<1x8x8xf32>
    %48 = tpu.matmul %47, %31, %cst_30 {dimension_numbers = #tpu.dot_dimension_numbers<[2], [1], [1], [2], [0, 0, 0, 1, 1, 2], [0], [0]>} : vector<1x8x8xbf16>, vector<1x8x8xbf16>, vector<1x8x8xf32> -> vector<1x8x8xf32>
    "tpu.trace_stop"() : () -> ()
    %49 = arith.truncf %48 : vector<1x8x8xf32> to vector<1x8x8xbf16>
    %c0_31 = arith.constant 0 : index
    %c0_32 = arith.constant 0 : index
    %c0_33 = arith.constant 0 : index
    %50 = vector.load %arg13[%c0_31, %c0_32, %c0_33] : memref<1x8x32xbf16, #tpu.memory_space<vmem>>, vector<1x8x8xbf16>
    tpu.vector_store %arg13[%c0_31, %c0_32, %c0_33], %49 {strides = array<i32>} : memref<1x8x32xbf16, #tpu.memory_space<vmem>>, vector<1x8x8xbf16>,
    %c0_34 = arith.constant 0 : index
    %c0_35 = arith.constant 0 : index
    %c8 = arith.constant 8 : index
    %51 = vector.load %arg12[%c0_34, %c0_35, %c8] : memref<1x8x96xbf16, #tpu.memory_space<vmem>>, vector<1x8x8xbf16>
    %c0_36 = arith.constant 0 : index
    %c0_37 = arith.constant 0 : index
    %c40 = arith.constant 40 : index
    %52 = vector.load %arg12[%c0_36, %c0_37, %c40] : memref<1x8x96xbf16, #tpu.memory_space<vmem>>, vector<1x8x8xbf16>
    %c0_38 = arith.constant 0 : index
    %c0_39 = arith.constant 0 : index
    %c72 = arith.constant 72 : index
    %53 = vector.load %arg12[%c0_38, %c0_39, %c72] : memref<1x8x96xbf16, #tpu.memory_space<vmem>>, vector<1x8x8xbf16>
    "tpu.trace_start"() <{level = 10 : i32, message = "bqd,bkd->bqk"}> : () -> ()
    %cst_40 = arith.constant dense<0.000000e+00> : vector<1x8x8xf32>
    %54 = tpu.matmul %51, %52, %cst_40 {dimension_numbers = #tpu.dot_dimension_numbers<[2], [2], [1], [1], [0, 0, 0, 1, 1, 1], [0], [0]>} : vector<1x8x8xbf16>, vector<1x8x8xbf16>, vector<1x8x8xf32> -> vector<1x8x8xf32>
    "tpu.trace_stop"() : () -> ()
    %55 = vector.broadcast %5 : f32 to vector<1x8x8xf32>
    %56 = arith.mulf %54, %55 : vector<1x8x8xf32>
    %57 = vector.broadcast %6 : vector<1x1x8xf32> to vector<1x8x8xf32>
    %58 = arith.addf %56, %57 : vector<1x8x8xf32>
    %cst_41 = arith.constant dense<0xFF800000> : vector<1x8xf32>
    %59 = vector.multi_reduction <maximumf>, %58, %cst_41 [2] : vector<1x8x8xf32> to vector<1x8xf32>
    %60 = vector.shape_cast %59 : vector<1x8xf32> to vector<1x8x1xf32>
    %61 = vector.broadcast %60 : vector<1x8x1xf32> to vector<1x8x8xf32>
    %62 = arith.subf %58, %61 : vector<1x8x8xf32>
    %63 = math.exp %62 : vector<1x8x8xf32>
    %cst_42 = arith.constant dense<0.000000e+00> : vector<1x8xf32>
    %64 = vector.multi_reduction <add>, %63, %cst_42 [2] : vector<1x8x8xf32> to vector<1x8xf32>
    %65 = vector.shape_cast %64 : vector<1x8xf32> to vector<1x8x1xf32>
    %66 = tpu.reciprocal %65 {approx = true} : vector<1x8x1xf32> -> vector<1x8x1xf32>
    %67 = vector.broadcast %66 : vector<1x8x1xf32> to vector<1x8x8xf32>
    %68 = arith.mulf %63, %67 : vector<1x8x8xf32>
    %69 = arith.truncf %68 : vector<1x8x8xf32> to vector<1x8x8xbf16>
    "tpu.trace_start"() <{level = 10 : i32, message = "bqk,bkd->bqd"}> : () -> ()
    %cst_43 = arith.constant dense<0.000000e+00> : vector<1x8x8xf32>
    %70 = tpu.matmul %69, %53, %cst_43 {dimension_numbers = #tpu.dot_dimension_numbers<[2], [1], [1], [2], [0, 0, 0, 1, 1, 2], [0], [0]>} : vector<1x8x8xbf16>, vector<1x8x8xbf16>, vector<1x8x8xf32> -> vector<1x8x8xf32>
    "tpu.trace_stop"() : () -> ()
    %71 = arith.truncf %70 : vector<1x8x8xf32> to vector<1x8x8xbf16>
    %c0_44 = arith.constant 0 : index
    %c0_45 = arith.constant 0 : index
    %c8_46 = arith.constant 8 : index
    %72 = vector.load %arg13[%c0_44, %c0_45, %c8_46] : memref<1x8x32xbf16, #tpu.memory_space<vmem>>, vector<1x8x8xbf16>
    tpu.vector_store %arg13[%c0_44, %c0_45, %c8_46], %71 {strides = array<i32>} : memref<1x8x32xbf16, #tpu.memory_space<vmem>>, vector<1x8x8xbf16>,
    %c0_47 = arith.constant 0 : index
    %c0_48 = arith.constant 0 : index
    %c16 = arith.constant 16 : index
    %73 = vector.load %arg12[%c0_47, %c0_48, %c16] : memref<1x8x96xbf16, #tpu.memory_space<vmem>>, vector<1x8x8xbf16>
    %c0_49 = arith.constant 0 : index
    %c0_50 = arith.constant 0 : index
    %c48 = arith.constant 48 : index
    %74 = vector.load %arg12[%c0_49, %c0_50, %c48] : memref<1x8x96xbf16, #tpu.memory_space<vmem>>, vector<1x8x8xbf16>
    %c0_51 = arith.constant 0 : index
    %c0_52 = arith.constant 0 : index
    %c80 = arith.constant 80 : index
    %75 = vector.load %arg12[%c0_51, %c0_52, %c80] : memref<1x8x96xbf16, #tpu.memory_space<vmem>>, vector<1x8x8xbf16>
    "tpu.trace_start"() <{level = 10 : i32, message = "bqd,bkd->bqk"}> : () -> ()
    %cst_53 = arith.constant dense<0.000000e+00> : vector<1x8x8xf32>
    %76 = tpu.matmul %73, %74, %cst_53 {dimension_numbers = #tpu.dot_dimension_numbers<[2], [2], [1], [1], [0, 0, 0, 1, 1, 1], [0], [0]>} : vector<1x8x8xbf16>, vector<1x8x8xbf16>, vector<1x8x8xf32> -> vector<1x8x8xf32>
    "tpu.trace_stop"() : () -> ()
    %77 = vector.broadcast %5 : f32 to vector<1x8x8xf32>
    %78 = arith.mulf %76, %77 : vector<1x8x8xf32>
    %79 = vector.broadcast %6 : vector<1x1x8xf32> to vector<1x8x8xf32>
    %80 = arith.addf %78, %79 : vector<1x8x8xf32>
    %cst_54 = arith.constant dense<0xFF800000> : vector<1x8xf32>
    %81 = vector.multi_reduction <maximumf>, %80, %cst_54 [2] : vector<1x8x8xf32> to vector<1x8xf32>
    %82 = vector.shape_cast %81 : vector<1x8xf32> to vector<1x8x1xf32>
    %83 = vector.broadcast %82 : vector<1x8x1xf32> to vector<1x8x8xf32>
    %84 = arith.subf %80, %83 : vector<1x8x8xf32>
    %85 = math.exp %84 : vector<1x8x8xf32>
    %cst_55 = arith.constant dense<0.000000e+00> : vector<1x8xf32>
    %86 = vector.multi_reduction <add>, %85, %cst_55 [2] : vector<1x8x8xf32> to vector<1x8xf32>
    %87 = vector.shape_cast %86 : vector<1x8xf32> to vector<1x8x1xf32>
    %88 = tpu.reciprocal %87 {approx = true} : vector<1x8x1xf32> -> vector<1x8x1xf32>
    %89 = vector.broadcast %88 : vector<1x8x1xf32> to vector<1x8x8xf32>
    %90 = arith.mulf %85, %89 : vector<1x8x8xf32>
    %91 = arith.truncf %90 : vector<1x8x8xf32> to vector<1x8x8xbf16>
    "tpu.trace_start"() <{level = 10 : i32, message = "bqk,bkd->bqd"}> : () -> ()
    %cst_56 = arith.constant dense<0.000000e+00> : vector<1x8x8xf32>
    %92 = tpu.matmul %91, %75, %cst_56 {dimension_numbers = #tpu.dot_dimension_numbers<[2], [1], [1], [2], [0, 0, 0, 1, 1, 2], [0], [0]>} : vector<1x8x8xbf16>, vector<1x8x8xbf16>, vector<1x8x8xf32> -> vector<1x8x8xf32>
    "tpu.trace_stop"() : () -> ()
    %93 = arith.truncf %92 : vector<1x8x8xf32> to vector<1x8x8xbf16>
    %c0_57 = arith.constant 0 : index
    %c0_58 = arith.constant 0 : index
    %c16_59 = arith.constant 16 : index
    %94 = vector.load %arg13[%c0_57, %c0_58, %c16_59] : memref<1x8x32xbf16, #tpu.memory_space<vmem>>, vector<1x8x8xbf16>
    tpu.vector_store %arg13[%c0_57, %c0_58, %c16_59], %93 {strides = array<i32>} : memref<1x8x32xbf16, #tpu.memory_space<vmem>>, vector<1x8x8xbf16>,
    %c0_60 = arith.constant 0 : index
    %c0_61 = arith.constant 0 : index
    %c24 = arith.constant 24 : index
    %95 = vector.load %arg12[%c0_60, %c0_61, %c24] : memref<1x8x96xbf16, #tpu.memory_space<vmem>>, vector<1x8x8xbf16>
    %c0_62 = arith.constant 0 : index
    %c0_63 = arith.constant 0 : index
    %c56 = arith.constant 56 : index
    %96 = vector.load %arg12[%c0_62, %c0_63, %c56] : memref<1x8x96xbf16, #tpu.memory_space<vmem>>, vector<1x8x8xbf16>
    %c0_64 = arith.constant 0 : index
    %c0_65 = arith.constant 0 : index
    %c88 = arith.constant 88 : index
    %97 = vector.load %arg12[%c0_64, %c0_65, %c88] : memref<1x8x96xbf16, #tpu.memory_space<vmem>>, vector<1x8x8xbf16>
    "tpu.trace_start"() <{level = 10 : i32, message = "bqd,bkd->bqk"}> : () -> ()
    %cst_66 = arith.constant dense<0.000000e+00> : vector<1x8x8xf32>
    %98 = tpu.matmul %95, %96, %cst_66 {dimension_numbers = #tpu.dot_dimension_numbers<[2], [2], [1], [1], [0, 0, 0, 1, 1, 1], [0], [0]>} : vector<1x8x8xbf16>, vector<1x8x8xbf16>, vector<1x8x8xf32> -> vector<1x8x8xf32>
    "tpu.trace_stop"() : () -> ()
    %99 = vector.broadcast %5 : f32 to vector<1x8x8xf32>
    %100 = arith.mulf %98, %99 : vector<1x8x8xf32>
    %101 = vector.broadcast %6 : vector<1x1x8xf32> to vector<1x8x8xf32>
    %102 = arith.addf %100, %101 : vector<1x8x8xf32>
    %cst_67 = arith.constant dense<0xFF800000> : vector<1x8xf32>
    %103 = vector.multi_reduction <maximumf>, %102, %cst_67 [2] : vector<1x8x8xf32> to vector<1x8xf32>
    %104 = vector.shape_cast %103 : vector<1x8xf32> to vector<1x8x1xf32>
    %105 = vector.broadcast %104 : vector<1x8x1xf32> to vector<1x8x8xf32>
    %106 = arith.subf %102, %105 : vector<1x8x8xf32>
    %107 = math.exp %106 : vector<1x8x8xf32>
    %cst_68 = arith.constant dense<0.000000e+00> : vector<1x8xf32>
    %108 = vector.multi_reduction <add>, %107, %cst_68 [2] : vector<1x8x8xf32> to vector<1x8xf32>
    %109 = vector.shape_cast %108 : vector<1x8xf32> to vector<1x8x1xf32>
    %110 = tpu.reciprocal %109 {approx = true} : vector<1x8x1xf32> -> vector<1x8x1xf32>
    %111 = vector.broadcast %110 : vector<1x8x1xf32> to vector<1x8x8xf32>
    %112 = arith.mulf %107, %111 : vector<1x8x8xf32>
    %113 = arith.truncf %112 : vector<1x8x8xf32> to vector<1x8x8xbf16>
    "tpu.trace_start"() <{level = 10 : i32, message = "bqk,bkd->bqd"}> : () -> ()
    %cst_69 = arith.constant dense<0.000000e+00> : vector<1x8x8xf32>
    %114 = tpu.matmul %113, %97, %cst_69 {dimension_numbers = #tpu.dot_dimension_numbers<[2], [1], [1], [2], [0, 0, 0, 1, 1, 2], [0], [0]>} : vector<1x8x8xbf16>, vector<1x8x8xbf16>, vector<1x8x8xf32> -> vector<1x8x8xf32>
    "tpu.trace_stop"() : () -> ()
    %115 = arith.truncf %114 : vector<1x8x8xf32> to vector<1x8x8xbf16>
    %c0_70 = arith.constant 0 : index
    %c0_71 = arith.constant 0 : index
    %c24_72 = arith.constant 24 : index
    %116 = vector.load %arg13[%c0_70, %c0_71, %c24_72] : memref<1x8x32xbf16, #tpu.memory_space<vmem>>, vector<1x8x8xbf16>
    tpu.vector_store %arg13[%c0_70, %c0_71, %c24_72], %115 {strides = array<i32>} : memref<1x8x32xbf16, #tpu.memory_space<vmem>>, vector<1x8x8xbf16>,
    %c0_73 = arith.constant 0 : index
    %c0_74 = arith.constant 0 : index
    %c0_75 = arith.constant 0 : index
    %117 = vector.load %arg13[%c0_73, %c0_74, %c0_75] : memref<1x8x32xbf16, #tpu.memory_space<vmem>>, vector<1x8x32xbf16>
    %118 = vector.shape_cast %117 : vector<1x8x32xbf16> to vector<8x32xbf16>
    %c0_76 = arith.constant 0 : index
    %c0_77 = arith.constant 0 : index
    %c0_78 = arith.constant 0 : index
    %119 = vector.load %arg6[%c0_76, %c0_77, %c0_78] : memref<1x32x32xbf16, #tpu.memory_space<vmem>>, vector<1x32x32xbf16>
    %120 = vector.shape_cast %119 : vector<1x32x32xbf16> to vector<32x32xbf16>
    %cst_79 = arith.constant dense<0.000000e+00> : vector<8x32xf32>
    %121 = tpu.matmul %118, %120, %cst_79 {dimension_numbers = #tpu.dot_dimension_numbers<[1], [0], [0], [1], [0, 0, 1, 1], [], []>} : vector<8x32xbf16>, vector<32x32xbf16>, vector<8x32xf32> -> vector<8x32xf32>
    %122 = vector.broadcast %10 : vector<1x32xf32> to vector<8x32xf32>
    %123 = arith.addf %121, %122 : vector<8x32xf32>
    %124 = arith.addf %123, %16 : vector<8x32xf32>
    %cst_80 = arith.constant dense<0.000000e+00> : vector<8xf32>
    %125 = vector.multi_reduction <add>, %124, %cst_80 [1] : vector<8x32xf32> to vector<8xf32>
    %126 = vector.shape_cast %125 : vector<8xf32> to vector<8x1xf32>
    %cst_81 = arith.constant 3.200000e+01 : f32
    %127 = vector.broadcast %cst_81 : f32 to vector<8x1xf32>
    %128 = arith.divf %126, %127 : vector<8x1xf32>
    %129 = vector.broadcast %128 : vector<8x1xf32> to vector<8x32xf32>
    %130 = arith.subf %124, %129 : vector<8x32xf32>
    %131 = arith.mulf %130, %130 : vector<8x32xf32>
    %cst_82 = arith.constant dense<0.000000e+00> : vector<8xf32>
    %132 = vector.multi_reduction <add>, %131, %cst_82 [1] : vector<8x32xf32> to vector<8xf32>
    %133 = vector.shape_cast %132 : vector<8xf32> to vector<8x1xf32>
    %cst_83 = arith.constant 0.0322580636 : f32
    %134 = vector.broadcast %cst_83 : f32 to vector<8x1xf32>
    %135 = arith.mulf %133, %134 : vector<8x1xf32>
    %136 = math.sqrt %135 : vector<8x1xf32>
    %cst_84 = arith.constant 9.99999997E-7 : f32
    %137 = vector.broadcast %cst_84 : f32 to vector<8x1xf32>
    %138 = arith.addf %136, %137 : vector<8x1xf32>
    %cst_85 = arith.constant 1.000000e+00 : f32
    %139 = vector.broadcast %cst_85 : f32 to vector<8x1xf32>
    %140 = arith.divf %139, %138 : vector<8x1xf32>
    %141 = vector.broadcast %140 : vector<8x1xf32> to vector<8x32xf32>
    %142 = arith.mulf %130, %141 : vector<8x32xf32>
    %143 = vector.broadcast %11 : vector<1x32xf32> to vector<8x32xf32>
    %144 = arith.mulf %143, %142 : vector<8x32xf32>
    %145 = vector.broadcast %12 : vector<1x32xf32> to vector<8x32xf32>
    %146 = arith.addf %144, %145 : vector<8x32xf32>
    %147 = arith.truncf %146 : vector<8x32xf32> to vector<8x32xbf16>
    %c0_86 = arith.constant 0 : index
    %c0_87 = arith.constant 0 : index
    %c0_88 = arith.constant 0 : index
    %148 = vector.load %arg7[%c0_86, %c0_87, %c0_88] : memref<1x32x64xbf16, #tpu.memory_space<vmem>>, vector<1x32x64xbf16>
    %149 = vector.shape_cast %148 : vector<1x32x64xbf16> to vector<32x64xbf16>
    %cst_89 = arith.constant dense<0.000000e+00> : vector<8x64xf32>
    %150 = tpu.matmul %147, %149, %cst_89 {dimension_numbers = #tpu.dot_dimension_numbers<[1], [0], [0], [1], [0, 0, 1, 1], [], []>} : vector<8x32xbf16>, vector<32x64xbf16>, vector<8x64xf32> -> vector<8x64xf32>
    %c0_90 = arith.constant 0 : index
    %c0_91 = arith.constant 0 : index
    %c0_92 = arith.constant 0 : index
    %151 = vector.load %arg8[%c0_90, %c0_91, %c0_92] : memref<1x1x64xbf16, #tpu.memory_space<vmem>>, vector<1x1x64xbf16>
    %152 = vector.shape_cast %151 : vector<1x1x64xbf16> to vector<1x64xbf16>
    %153 = arith.extf %152 : vector<1x64xbf16> to vector<1x64xf32>
    %154 = vector.broadcast %153 : vector<1x64xf32> to vector<8x64xf32>
    %155 = arith.addf %150, %154 : vector<8x64xf32>
    %cst_93 = arith.constant 5.000000e-01 : f32
    %156 = vector.broadcast %cst_93 : f32 to vector<8x64xf32>
    %157 = arith.mulf %156, %155 : vector<8x64xf32>
    %cst_94 = arith.constant 0.707106769 : f32
    %158 = vector.broadcast %cst_94 : f32 to vector<8x64xf32>
    %159 = arith.mulf %155, %158 : vector<8x64xf32>
    %160 = math.erf %159 : vector<8x64xf32>
    %cst_95 = arith.constant 1.000000e+00 : f32
    %161 = vector.broadcast %cst_95 : f32 to vector<8x64xf32>
    %162 = arith.addf %161, %160 : vector<8x64xf32>
    %163 = arith.mulf %157, %162 : vector<8x64xf32>
    %164 = arith.truncf %163 : vector<8x64xf32> to vector<8x64xbf16>
    %c0_96 = arith.constant 0 : index
    %c0_97 = arith.constant 0 : index
    %c0_98 = arith.constant 0 : index
    %165 = vector.load %arg9[%c0_96, %c0_97, %c0_98] : memref<1x64x32xbf16, #tpu.memory_space<vmem>>, vector<1x64x32xbf16>
    %166 = vector.shape_cast %165 : vector<1x64x32xbf16> to vector<64x32xbf16>
    %cst_99 = arith.constant dense<0.000000e+00> : vector<8x32xf32>
    %167 = tpu.matmul %164, %166, %cst_99 {dimension_numbers = #tpu.dot_dimension_numbers<[1], [0], [0], [1], [0, 0, 1, 1], [], []>} : vector<8x64xbf16>, vector<64x32xbf16>, vector<8x32xf32> -> vector<8x32xf32>
    %168 = vector.broadcast %13 : vector<1x32xf32> to vector<8x32xf32>
    %169 = arith.addf %167, %168 : vector<8x32xf32>
    %170 = arith.addf %169, %146 : vector<8x32xf32>
    %cst_100 = arith.constant dense<0.000000e+00> : vector<8xf32>
    %171 = vector.multi_reduction <add>, %170, %cst_100 [1] : vector<8x32xf32> to vector<8xf32>
    %172 = vector.shape_cast %171 : vector<8xf32> to vector<8x1xf32>
    %cst_101 = arith.constant 3.200000e+01 : f32
    %173 = vector.broadcast %cst_101 : f32 to vector<8x1xf32>
    %174 = arith.divf %172, %173 : vector<8x1xf32>
    %175 = vector.broadcast %174 : vector<8x1xf32> to vector<8x32xf32>
    %176 = arith.subf %170, %175 : vector<8x32xf32>
    %177 = arith.mulf %176, %176 : vector<8x32xf32>
    %cst_102 = arith.constant dense<0.000000e+00> : vector<8xf32>
    %178 = vector.multi_reduction <add>, %177, %cst_102 [1] : vector<8x32xf32> to vector<8xf32>
    %179 = vector.shape_cast %178 : vector<8xf32> to vector<8x1xf32>
    %cst_103 = arith.constant 0.0322580636 : f32
    %180 = vector.broadcast %cst_103 : f32 to vector<8x1xf32>
    %181 = arith.mulf %179, %180 : vector<8x1xf32>
    %182 = math.sqrt %181 : vector<8x1xf32>
    %cst_104 = arith.constant 9.99999997E-7 : f32
    %183 = vector.broadcast %cst_104 : f32 to vector<8x1xf32>
    %184 = arith.addf %182, %183 : vector<8x1xf32>
    %cst_105 = arith.constant 1.000000e+00 : f32
    %185 = vector.broadcast %cst_105 : f32 to vector<8x1xf32>
    %186 = arith.divf %185, %184 : vector<8x1xf32>
    %187 = vector.broadcast %186 : vector<8x1xf32> to vector<8x32xf32>
    %188 = arith.mulf %176, %187 : vector<8x32xf32>
    %189 = vector.broadcast %14 : vector<1x32xf32> to vector<8x32xf32>
    %190 = arith.mulf %189, %188 : vector<8x32xf32>
    %191 = vector.broadcast %15 : vector<1x32xf32> to vector<8x32xf32>
    %192 = arith.addf %190, %191 : vector<8x32xf32>
    %193 = vector.shape_cast %192 : vector<8x32xf32> to vector<1x8x32xf32>
    %c0_106 = arith.constant 0 : index
    %c0_107 = arith.constant 0 : index
    %c0_108 = arith.constant 0 : index
    %194 = vector.load %arg11[%c0_106, %c0_107, %c0_108] : memref<1x8x32xf32, #tpu.memory_space<vmem>>, vector<1x8x32xf32>
    tpu.vector_store %arg11[%c0_106, %c0_107, %c0_108], %193 {strides = array<i32>} : memref<1x8x32xf32, #tpu.memory_space<vmem>>, vector<1x8x32xf32>,
    return
  }
  func.func @transform_0(%arg0: i32, %arg1: i32) -> (i32, i32, i32) {
    %c0_i32 = arith.constant 0 : i32
    %c0_i32_0 = arith.constant 0 : i32
    %c0_i32_1 = arith.constant 0 : i32
    return %arg0, %c0_i32, %c0_i32_0 : i32, i32, i32
  }
  func.func @transform_1(%arg0: i32, %arg1: i32) -> (i32, i32, i32) {
    %c0_i32 = arith.constant 0 : i32
    %c0_i32_0 = arith.constant 0 : i32
    %c0_i32_1 = arith.constant 0 : i32
    return %arg0, %c0_i32, %c0_i32_0 : i32, i32, i32
  }
  func.func @transform_2(%arg0: i32, %arg1: i32) -> (i32, i32, i32) {
    %c0_i32 = arith.constant 0 : i32
    %c0_i32_0 = arith.constant 0 : i32
    %c0_i32_1 = arith.constant 0 : i32
    return %arg1, %c0_i32, %c0_i32_0 : i32, i32, i32
  }
  func.func @transform_3(%arg0: i32, %arg1: i32) -> (i32, i32, i32) {
    %c0_i32 = arith.constant 0 : i32
    %c0_i32_0 = arith.constant 0 : i32
    %c0_i32_1 = arith.constant 0 : i32
    return %arg1, %c0_i32, %c0_i32_0 : i32, i32, i32
  }
  func.func @transform_4(%arg0: i32, %arg1: i32) -> (i32, i32, i32) {
    %c0_i32 = arith.constant 0 : i32
    %c0_i32_0 = arith.constant 0 : i32
    %c0_i32_1 = arith.constant 0 : i32
    return %arg1, %c0_i32, %c0_i32_0 : i32, i32, i32
  }
  func.func @transform_5(%arg0: i32, %arg1: i32) -> (i32, i32, i32) {
    %c0_i32 = arith.constant 0 : i32
    %c0_i32_0 = arith.constant 0 : i32
    %c0_i32_1 = arith.constant 0 : i32
    return %arg1, %c0_i32, %c0_i32_0 : i32, i32, i32
  }
  func.func @transform_6(%arg0: i32, %arg1: i32) -> (i32, i32, i32) {
    %c0_i32 = arith.constant 0 : i32
    %c0_i32_0 = arith.constant 0 : i32
    %c0_i32_1 = arith.constant 0 : i32
    return %arg1, %c0_i32, %c0_i32_0 : i32, i32, i32
  }
  func.func @transform_7(%arg0: i32, %arg1: i32) -> (i32, i32, i32) {
    %c0_i32 = arith.constant 0 : i32
    %c0_i32_0 = arith.constant 0 : i32
    %c0_i32_1 = arith.constant 0 : i32
    return %arg1, %c0_i32, %c0_i32_0 : i32, i32, i32
  }
  func.func @transform_8(%arg0: i32, %arg1: i32) -> (i32, i32, i32) {
    %c0_i32 = arith.constant 0 : i32
    %c0_i32_0 = arith.constant 0 : i32
    %c0_i32_1 = arith.constant 0 : i32
    return %arg1, %c0_i32, %c0_i32_0 : i32, i32, i32
  }
  func.func @transform_9(%arg0: i32, %arg1: i32) -> (i32, i32, i32) {
    %c0_i32 = arith.constant 0 : i32
    %c0_i32_0 = arith.constant 0 : i32
    %c0_i32_1 = arith.constant 0 : i32
    return %arg0, %c0_i32, %c0_i32_0 : i32, i32, i32
  }
}

</mosaic_0001>

<llo_original>
// kernel: tpu_custom_call.1
$region0: #{tpu_custom_call.1}
  #allocation0 [shape = 'u32[]', space=smem, size = 0x4, offset = 0x4, fixed_abs, tag = 'smem constant byte address 0x4 - core index']
  #allocation1 [shape = 'u32[144,128]{1,0:T(1,128)}', space=vmem, size = 0x12000, scoped, tag = 'internal scratch']
  #allocation2 [shape = 'bf16[1,8,96]{2,1,0:T(8,128)(2,1)}', space=vmem, size = 0x800, scoped, tag = 'scratch operand']
  #allocation3 [shape = 'bf16[1,8,32]{2,1,0:T(8,128)(2,1)}', space=vmem, size = 0x800, scoped, tag = 'scratch operand']
  %s0 = inlined_call_operand.hbm [shape: f32[2,8,32], index: 0, kind: input, shape index: {}]
  %s1 = inlined_call_operand.vmem [shape: f32[2,1,8], index: 1, kind: input, shape index: {}]
  %s2 = inlined_call_operand.vmem [shape: bf16[2,32,96], index: 2, kind: input, shape index: {}]
  %s3 = inlined_call_operand.vmem [shape: bf16[2,1,96], index: 3, kind: input, shape index: {}]
  %s4 = inlined_call_operand.vmem [shape: bf16[2,32,32], index: 4, kind: input, shape index: {}]
  %s5 = inlined_call_operand.vmem [shape: bf16[2,32,64], index: 5, kind: input, shape index: {}]
  %s6 = inlined_call_operand.vmem [shape: bf16[2,1,64], index: 6, kind: input, shape index: {}]
  %s7 = inlined_call_operand.vmem [shape: bf16[2,64,32], index: 7, kind: input, shape index: {}]
  %s8 = inlined_call_operand.hbm [shape: bf16[2,8,32], index: 8, kind: input, shape index: {}]
  %s9 = inlined_call_operand.hbm [shape: f32[2,8,32], index: 9, kind: output, shape index: {}]
  %s10 = sld [smem:[#allocation0]]
  $region81: #{tpu_custom_call.1} parent=0
    _
  %s12 = ssub.s32 1, %s10
  %s13 = scalar_select 0, %s12, %s10
  $region1: #{tpu_custom_call.1} parent=0
    #allocation4 [shape = 'u8[8192]{0}', space=vmem, size = 0x2000, scoped, tag = 'input window, operand 0']
    #allocation5 [shape = 's32[2]{0}', space=sflag, size = 0x8, scoped, tag = 'scoped memory for tpu_custom_call.1']
    #allocation6 [shape = 's32[2]{0}', space=sflag, size = 0x8, scoped, tag = 'scoped memory for tpu_custom_call.1']
    #allocation7 [shape = 'u8[4096]{0}', space=vmem, size = 0x1000, scoped, tag = 'input window, operand 8']
    #allocation8 [shape = 's32[2]{0}', space=sflag, size = 0x8, scoped, tag = 'scoped memory for tpu_custom_call.1']
    #allocation9 [shape = 'u8[8192]{0}', space=vmem, size = 0x2000, scoped, tag = 'output window, operand 0']
    %14 = vsyncpa [#allocation5], 0
    %s15 = scalar_lea.sflag [#allocation5], 1
    %16 = vsyncpa %s15, 0
    %17 = vsyncpa [#allocation8], 0
    %s18 = scalar_lea.sflag [#allocation8], 1
    %19 = vsyncpa %s18, 0
    %20 = vsyncpa [#allocation6], 0
    %s21 = scalar_lea.sflag [#allocation6], 1
    %22 = vsyncpa %s21, 0
    loop: start=0, step=1, limit=6
    $region2: #{tpu_custom_call.1} parent=1 // loop_pre_header
      _
    $region3: #{tpu_custom_call.1} parent=1 // loop_header
      %s24 = sphi 0, %s28
      %p25 = scmp.ge.s32.totalorder %s24, 6
      %s31 = sphi 0, %s43
      %s32 = sphi 0, %s39
      %s33 = sphi 0, %s31
      %s34 = sphi 0, %s32
      %s35 = sphi 0, %s33
      %s36 = sphi 0, %s34
      %s46 = sphi 0, %s48
      %s49 = sphi 0, %s46
      %s50 = sphi 0, %s49
      %s66 = sphi 0, %s50
      %s72 = sphi 0, %s74
      %s75 = sphi 0, %s72
      %s76 = sphi 0, %s75
      %s92 = sphi 0, %s76
      %s98 = sphi 0, %s100
      %s101 = sphi 0, %s98
      %s102 = sphi 0, %s101
      %s118 = sphi 0, %s102
      %s124 = sphi 0, %s126
      %s127 = sphi 0, %s124
      %s128 = sphi 0, %s127
      %s144 = sphi 0, %s128
      %s150 = sphi 0, %s152
      %s153 = sphi 0, %s150
      %s154 = sphi 0, %s153
      %s170 = sphi 0, %s154
      %s176 = sphi 0, %s178
      %s179 = sphi 0, %s176
      %s180 = sphi 0, %s179
      %s196 = sphi 0, %s180
      %s202 = sphi 0, %s204
      %s205 = sphi 0, %s202
      %s206 = sphi 0, %s205
      %s222 = sphi 0, %s206
      %s228 = sphi 0, %s230
      %s231 = sphi 0, %s228
      %s232 = sphi 0, %s231
      %s248 = sphi 0, %s232
      %s254 = sphi 0, %s256
      %s257 = sphi 0, %s254
      %s258 = sphi 0, %s257
      %s274 = sphi 0, %s258
      %s280 = sphi 0, %s282
      %s283 = sphi 0, %s280
      %s284 = sphi 0, %s283
      %s300 = sphi 0, %s284
    $region4: #{tpu_custom_call.1} parent=1 // loop_header_branch
      %27 = sbr.rel (%p25) target = $region8
    $region5: #{tpu_custom_call.1} parent=1 // loop_body
      %s29 = ssub.s32 %s24, 1
      %s30 = ssub.s32 %s24, 2
      %s37 = sadd.s32 1, %s32
      %p38 = scmp.ge.s32.totalorder %s37, 2
      %s39 = scalar_select %p38, 0, %s37
      %s40 = sadd.s32 1, %s31
      %s41 = scalar_select %p38, %s40, %s31
      %p42 = scmp.ge.s32.totalorder %s41, 2
      %s43 = scalar_select %p42, 0, %s41
      %s44 = ssub.s32 %s31, %s43
      %p45 = scmp.eq.s32.totalorder %s44, 0
      %s47 = sadd.s32 %s46, 1
      %s48 = scalar_select %p45, %s46, %s47
      %p51 = pneg %p45
      %p52 = scmp.eq.s32.totalorder %s24, 3
      %p53 = por %p51, %p52
      %p54 = scmp.ne.s32.totalorder %s46, %s49
      %p55 = scmp.eq.s32.totalorder %s24, 0
      %p56 = por %p54, %p55
      %p57 = scmp.ne.s32.totalorder %s46, %s49
      %p58 = scmp.eq.s32.totalorder %s29, 3
      %p59 = por %p57, %p58
      %p60 = scmp.ne.s32.totalorder %s49, %s50
      %p61 = scmp.eq.s32.totalorder %s29, 0
      %p62 = por %p60, %p61
      %p63 = scmp.ne.s32.totalorder %s49, %s50
      %p64 = scmp.eq.s32.totalorder %s30, 3
      %p65 = por %p63, %p64
      %p67 = scmp.ne.s32.totalorder %s50, %s66
      %p68 = scmp.eq.s32.totalorder %s30, 0
      %p69 = por %p67, %p68
      %s70 = ssub.s32 %s31, %s43
      %p71 = scmp.eq.s32.totalorder %s70, 0
      %s73 = sadd.s32 %s72, 1
      %s74 = scalar_select %p71, %s72, %s73
      %p77 = pneg %p71
      %p78 = scmp.eq.s32.totalorder %s24, 3
      %p79 = por %p77, %p78
      %p80 = scmp.ne.s32.totalorder %s72, %s75
      %p81 = scmp.eq.s32.totalorder %s24, 0
      %p82 = por %p80, %p81
      %p83 = scmp.ne.s32.totalorder %s72, %s75
      %p84 = scmp.eq.s32.totalorder %s29, 3
      %p85 = por %p83, %p84
      %p86 = scmp.ne.s32.totalorder %s75, %s76
      %p87 = scmp.eq.s32.totalorder %s29, 0
      %p88 = por %p86, %p87
      %p89 = scmp.ne.s32.totalorder %s75, %s76
      %p90 = scmp.eq.s32.totalorder %s30, 3
      %p91 = por %p89, %p90
      %p93 = scmp.ne.s32.totalorder %s76, %s92
      %p94 = scmp.eq.s32.totalorder %s30, 0
      %p95 = por %p93, %p94
      %s96 = ssub.s32 %s32, %s39
      %p97 = scmp.eq.s32.totalorder %s96, 0
      %s99 = sadd.s32 %s98, 1
      %s100 = scalar_select %p97, %s98, %s99
      %p103 = pneg %p97
      %p104 = scmp.eq.s32.totalorder %s24, 3
      %p105 = por %p103, %p104
      %p106 = scmp.ne.s32.totalorder %s98, %s101
      %p107 = scmp.eq.s32.totalorder %s24, 0
      %p108 = por %p106, %p107
      %p109 = scmp.ne.s32.totalorder %s98, %s101
      %p110 = scmp.eq.s32.totalorder %s29, 3
      %p111 = por %p109, %p110
      %p112 = scmp.ne.s32.totalorder %s101, %s102
      %p113 = scmp.eq.s32.totalorder %s29, 0
      %p114 = por %p112, %p113
      %p115 = scmp.ne.s32.totalorder %s101, %s102
      %p116 = scmp.eq.s32.totalorder %s30, 3
      %p117 = por %p115, %p116
      %p119 = scmp.ne.s32.totalorder %s102, %s118
      %p120 = scmp.eq.s32.totalorder %s30, 0
      %p121 = por %p119, %p120
      %s122 = ssub.s32 %s32, %s39
      %p123 = scmp.eq.s32.totalorder %s122, 0
      %s125 = sadd.s32 %s124, 1
      %s126 = scalar_select %p123, %s124, %s125
      %p129 = pneg %p123
      %p130 = scmp.eq.s32.totalorder %s24, 3
      %p131 = por %p129, %p130
      %p132 = scmp.ne.s32.totalorder %s124, %s127
      %p133 = scmp.eq.s32.totalorder %s24, 0
      %p134 = por %p132, %p133
      %p135 = scmp.ne.s32.totalorder %s124, %s127
      %p136 = scmp.eq.s32.totalorder %s29, 3
      %p137 = por %p135, %p136
      %p138 = scmp.ne.s32.totalorder %s127, %s128
      %p139 = scmp.eq.s32.totalorder %s29, 0
      %p140 = por %p138, %p139
      %p141 = scmp.ne.s32.totalorder %s127, %s128
      %p142 = scmp.eq.s32.totalorder %s30, 3
      %p143 = por %p141, %p142
      %p145 = scmp.ne.s32.totalorder %s128, %s144
      %p146 = scmp.eq.s32.totalorder %s30, 0
      %p147 = por %p145, %p146
      %s148 = ssub.s32 %s32, %s39
      %p149 = scmp.eq.s32.totalorder %s148, 0
      %s151 = sadd.s32 %s150, 1
      %s152 = scalar_select %p149, %s150, %s151
      %p155 = pneg %p149
      %p156 = scmp.eq.s32.totalorder %s24, 3
      %p157 = por %p155, %p156
      %p158 = scmp.ne.s32.totalorder %s150, %s153
      %p159 = scmp.eq.s32.totalorder %s24, 0
      %p160 = por %p158, %p159
      %p161 = scmp.ne.s32.totalorder %s150, %s153
      %p162 = scmp.eq.s32.totalorder %s29, 3
      %p163 = por %p161, %p162
      %p164 = scmp.ne.s32.totalorder %s153, %s154
      %p165 = scmp.eq.s32.totalorder %s29, 0
      %p166 = por %p164, %p165
      %p167 = scmp.ne.s32.totalorder %s153, %s154
      %p168 = scmp.eq.s32.totalorder %s30, 3
      %p169 = por %p167, %p168
      %p171 = scmp.ne.s32.totalorder %s154, %s170
      %p172 = scmp.eq.s32.totalorder %s30, 0
      %p173 = por %p171, %p172
      %s174 = ssub.s32 %s32, %s39
      %p175 = scmp.eq.s32.totalorder %s174, 0
      %s177 = sadd.s32 %s176, 1
      %s178 = scalar_select %p175, %s176, %s177
      %p181 = pneg %p175
      %p182 = scmp.eq.s32.totalorder %s24, 3
      %p183 = por %p181, %p182
      %p184 = scmp.ne.s32.totalorder %s176, %s179
      %p185 = scmp.eq.s32.totalorder %s24, 0
      %p186 = por %p184, %p185
      %p187 = scmp.ne.s32.totalorder %s176, %s179
      %p188 = scmp.eq.s32.totalorder %s29, 3
      %p189 = por %p187, %p188
      %p190 = scmp.ne.s32.totalorder %s179, %s180
      %p191 = scmp.eq.s32.totalorder %s29, 0
      %p192 = por %p190, %p191
      %p193 = scmp.ne.s32.totalorder %s179, %s180
      %p194 = scmp.eq.s32.totalorder %s30, 3
      %p195 = por %p193, %p194
      %p197 = scmp.ne.s32.totalorder %s180, %s196
      %p198 = scmp.eq.s32.totalorder %s30, 0
      %p199 = por %p197, %p198
      %s200 = ssub.s32 %s32, %s39
      %p201 = scmp.eq.s32.totalorder %s200, 0
      %s203 = sadd.s32 %s202, 1
      %s204 = scalar_select %p201, %s202, %s203
      %p207 = pneg %p201
      %p208 = scmp.eq.s32.totalorder %s24, 3
      %p209 = por %p207, %p208
      %p210 = scmp.ne.s32.totalorder %s202, %s205
      %p211 = scmp.eq.s32.totalorder %s24, 0
      %p212 = por %p210, %p211
      %p213 = scmp.ne.s32.totalorder %s202, %s205
      %p214 = scmp.eq.s32.totalorder %s29, 3
      %p215 = por %p213, %p214
      %p216 = scmp.ne.s32.totalorder %s205, %s206
      %p217 = scmp.eq.s32.totalorder %s29, 0
      %p218 = por %p216, %p217
      %p219 = scmp.ne.s32.totalorder %s205, %s206
      %p220 = scmp.eq.s32.totalorder %s30, 3
      %p221 = por %p219, %p220
      %p223 = scmp.ne.s32.totalorder %s206, %s222
      %p224 = scmp.eq.s32.totalorder %s30, 0
      %p225 = por %p223, %p224
      %s226 = ssub.s32 %s32, %s39
      %p227 = scmp.eq.s32.totalorder %s226, 0
      %s229 = sadd.s32 %s228, 1
      %s230 = scalar_select %p227, %s228, %s229
      %p233 = pneg %p227
      %p234 = scmp.eq.s32.totalorder %s24, 3
      %p235 = por %p233, %p234
      %p236 = scmp.ne.s32.totalorder %s228, %s231
      %p237 = scmp.eq.s32.totalorder %s24, 0
      %p238 = por %p236, %p237
      %p239 = scmp.ne.s32.totalorder %s228, %s231
      %p240 = scmp.eq.s32.totalorder %s29, 3
      %p241 = por %p239, %p240
      %p242 = scmp.ne.s32.totalorder %s231, %s232
      %p243 = scmp.eq.s32.totalorder %s29, 0
      %p244 = por %p242, %p243
      %p245 = scmp.ne.s32.totalorder %s231, %s232
      %p246 = scmp.eq.s32.totalorder %s30, 3
      %p247 = por %p245, %p246
      %p249 = scmp.ne.s32.totalorder %s232, %s248
      %p250 = scmp.eq.s32.totalorder %s30, 0
      %p251 = por %p249, %p250
      %s252 = ssub.s32 %s32, %s39
      %p253 = scmp.eq.s32.totalorder %s252, 0
      %s255 = sadd.s32 %s254, 1
      %s256 = scalar_select %p253, %s254, %s255
      %p259 = pneg %p253
      %p260 = scmp.eq.s32.totalorder %s24, 3
      %p261 = por %p259, %p260
      %p262 = scmp.ne.s32.totalorder %s254, %s257
      %p263 = scmp.eq.s32.totalorder %s24, 0
      %p264 = por %p262, %p263
      %p265 = scmp.ne.s32.totalorder %s254, %s257
      %p266 = scmp.eq.s32.totalorder %s29, 3
      %p267 = por %p265, %p266
      %p268 = scmp.ne.s32.totalorder %s257, %s258
      %p269 = scmp.eq.s32.totalorder %s29, 0
      %p270 = por %p268, %p269
      %p271 = scmp.ne.s32.totalorder %s257, %s258
      %p272 = scmp.eq.s32.totalorder %s30, 3
      %p273 = por %p271, %p272
      %p275 = scmp.ne.s32.totalorder %s258, %s274
      %p276 = scmp.eq.s32.totalorder %s30, 0
      %p277 = por %p275, %p276
      %s278 = ssub.s32 %s31, %s43
      %p279 = scmp.eq.s32.totalorder %s278, 0
      %s281 = sadd.s32 %s280, 1
      %s282 = scalar_select %p279, %s280, %s281
      %p285 = pneg %p279
      %p286 = scmp.eq.s32.totalorder %s24, 3
      %p287 = por %p285, %p286
      %p288 = scmp.ne.s32.totalorder %s280, %s283
      %p289 = scmp.eq.s32.totalorder %s24, 0
      %p290 = por %p288, %p289
      %p291 = scmp.ne.s32.totalorder %s280, %s283
      %p292 = scmp.eq.s32.totalorder %s29, 3
      %p293 = por %p291, %p292
      %p294 = scmp.ne.s32.totalorder %s283, %s284
      %p295 = scmp.eq.s32.totalorder %s29, 0
      %p296 = por %p294, %p295
      %p297 = scmp.ne.s32.totalorder %s283, %s284
      %p298 = scmp.eq.s32.totalorder %s30, 3
      %p299 = por %p297, %p298
      %p301 = scmp.ne.s32.totalorder %s284, %s300
      %p302 = scmp.eq.s32.totalorder %s30, 0
      %p303 = por %p301, %p302
      %p304 = scmp.le.s32.totalorder 1, %s24
      %p305 = scmp.lt.s32.totalorder %s24, 5
      %p306 = pnand %p304, %p305
      %p307 = pneg %p306
      // Predicated region
      $region9: #{tpu_custom_call.1} parent=5 // pred_check
        _
      $region10: #{tpu_custom_call.1} parent=5 // pred_check_branch
        %309 = sbr.rel (%p306) target = $region12
      $region11: #{tpu_custom_call.1} parent=5 // pred_region
        %s310 = ssub.s32 %s24, 1
      $region12: #{tpu_custom_call.1} parent=5 // pred_fallthru
        _
      %p311 = scmp.lt.s32.totalorder %s24, 4
      // Predicated region
      $region13: #{tpu_custom_call.1} parent=5 // pred_check
        %p312 = pneg %p311
      $region14: #{tpu_custom_call.1} parent=5 // pred_check_branch
        %314 = sbr.rel (%p312) target = $region16
      $region15: #{tpu_custom_call.1} parent=5 // pred_region
        // Predicated region
        $region17: #{tpu_custom_call.1} parent=15 // pred_check
          %p315 = pneg %p56
        $region18: #{tpu_custom_call.1} parent=15 // pred_check_branch
          %317 = sbr.rel (%p315) target = $region20
        $region19: #{tpu_custom_call.1} parent=15 // pred_region
          %s318 = sand.u32 %s46, 1
          %s319 = scalar_lea.sflag [#allocation5], %s318
          %s320 = sand.u32 %s46, 1
          %s321 = smul.addr %s320, 8
          %s322 = scalar_lea.vmem [#allocation4], %s321
          %s324 = ssub.s32 128, 128
          %325 = vsyncadd %s319, %s324
          %s326 = smul.addr %s31, 128
          %s327 = scalar_lea.hbm %s0, %s326
          %s329 = sshll.u32 %s322, 4
          %s330 = int_to_ptr.vmem [resolvable:$true] %s329
          %332 = dma.hbm_to_vmem [thread:$0]  %s327, 128, %s330, %s319
        $region20: #{tpu_custom_call.1} parent=15 // pred_fallthru
          _
        // Predicated region
        $region21: #{tpu_custom_call.1} parent=15 // pred_check
          %p333 = pneg %p82
        $region22: #{tpu_custom_call.1} parent=15 // pred_check_branch
          %335 = sbr.rel (%p333) target = $region24
        $region23: #{tpu_custom_call.1} parent=15 // pred_region
          %p336 = scmp.lt.s32.totalorder %s31, 1
          %s337 = scalar_select %p336, %s31, 1
          %s338 = scalar_lea.vmem %s1, %s337
        $region24: #{tpu_custom_call.1} parent=15 // pred_fallthru
          _
        // Predicated region
        $region25: #{tpu_custom_call.1} parent=15 // pred_check
          %p339 = pneg %p108
        $region26: #{tpu_custom_call.1} parent=15 // pred_check_branch
          %341 = sbr.rel (%p339) target = $region28
        $region27: #{tpu_custom_call.1} parent=15 // pred_region
          %p342 = scmp.lt.s32.totalorder %s32, 1
          %s343 = scalar_select %p342, %s32, 1
          %s344 = smul.addr %s343, 4
          %s345 = smul.addr %s344, 4
          %s346 = scalar_lea.vmem %s2, %s345
        $region28: #{tpu_custom_call.1} parent=15 // pred_fallthru
          _
        // Predicated region
        $region29: #{tpu_custom_call.1} parent=15 // pred_check
          %p347 = pneg %p134
        $region30: #{tpu_custom_call.1} parent=15 // pred_check_branch
          %349 = sbr.rel (%p347) target = $region32
        $region31: #{tpu_custom_call.1} parent=15 // pred_region
          %p350 = scmp.lt.s32.totalorder %s32, 1
          %s351 = scalar_select %p350, %s32, 1
          %s352 = scalar_lea.vmem %s3, %s351
        $region32: #{tpu_custom_call.1} parent=15 // pred_fallthru
          _
        // Predicated region
        $region33: #{tpu_custom_call.1} parent=15 // pred_check
          %p353 = pneg %p160
        $region34: #{tpu_custom_call.1} parent=15 // pred_check_branch
          %355 = sbr.rel (%p353) target = $region36
        $region35: #{tpu_custom_call.1} parent=15 // pred_region
          %p356 = scmp.lt.s32.totalorder %s32, 1
          %s357 = scalar_select %p356, %s32, 1
          %s358 = smul.addr %s357, 4
          %s359 = smul.addr %s358, 4
          %s360 = scalar_lea.vmem %s4, %s359
        $region36: #{tpu_custom_call.1} parent=15 // pred_fallthru
          _
        // Predicated region
        $region37: #{tpu_custom_call.1} parent=15 // pred_check
          %p361 = pneg %p186
        $region38: #{tpu_custom_call.1} parent=15 // pred_check_branch
          %363 = sbr.rel (%p361) target = $region40
        $region39: #{tpu_custom_call.1} parent=15 // pred_region
          %p364 = scmp.lt.s32.totalorder %s32, 1
          %s365 = scalar_select %p364, %s32, 1
          %s366 = smul.addr %s365, 4
          %s367 = smul.addr %s366, 4
          %s368 = scalar_lea.vmem %s5, %s367
        $region40: #{tpu_custom_call.1} parent=15 // pred_fallthru
          _
        // Predicated region
        $region41: #{tpu_custom_call.1} parent=15 // pred_check
          %p369 = pneg %p212
        $region42: #{tpu_custom_call.1} parent=15 // pred_check_branch
          %371 = sbr.rel (%p369) target = $region44
        $region43: #{tpu_custom_call.1} parent=15 // pred_region
          %p372 = scmp.lt.s32.totalorder %s32, 1
          %s373 = scalar_select %p372, %s32, 1
          %s374 = scalar_lea.vmem %s6, %s373
        $region44: #{tpu_custom_call.1} parent=15 // pred_fallthru
          _
        // Predicated region
        $region45: #{tpu_custom_call.1} parent=15 // pred_check
          %p375 = pneg %p238
        $region46: #{tpu_custom_call.1} parent=15 // pred_check_branch
          %377 = sbr.rel (%p375) target = $region48
        $region47: #{tpu_custom_call.1} parent=15 // pred_region
          %p378 = scmp.lt.s32.totalorder %s32, 1
          %s379 = scalar_select %p378, %s32, 1
          %s380 = smul.addr %s379, 8
          %s381 = smul.addr %s380, 4
          %s382 = scalar_lea.vmem %s7, %s381
        $region48: #{tpu_custom_call.1} parent=15 // pred_fallthru
          _
        // Predicated region
        $region49: #{tpu_custom_call.1} parent=15 // pred_check
          %p383 = pneg %p264
        $region50: #{tpu_custom_call.1} parent=15 // pred_check_branch
          %385 = sbr.rel (%p383) target = $region52
        $region51: #{tpu_custom_call.1} parent=15 // pred_region
          %s386 = sand.u32 %s254, 1
          %s387 = scalar_lea.sflag [#allocation8], %s386
          %s388 = sand.u32 %s254, 1
          %s389 = smul.addr %s388, 4
          %s390 = scalar_lea.vmem [#allocation7], %s389
          %s392 = ssub.s32 64, 64
          %393 = vsyncadd %s387, %s392
          %s394 = smul.addr %s32, 64
          %s395 = scalar_lea.hbm %s8, %s394
          %s397 = sshll.u32 %s390, 4
          %s398 = int_to_ptr.vmem [resolvable:$true] %s397
          %400 = dma.hbm_to_vmem [thread:$0]  %s395, 64, %s398, %s387
        $region52: #{tpu_custom_call.1} parent=15 // pred_fallthru
          _
      $region16: #{tpu_custom_call.1} parent=5 // pred_fallthru
        _
      %p401 = scmp.le.s32.totalorder 1, %s24
      %p402 = scmp.lt.s32.totalorder %s24, 5
      %p403 = pnand %p401, %p402
      %p404 = pneg %p403
      // Predicated region
      $region53: #{tpu_custom_call.1} parent=5 // pred_check
        _
      $region54: #{tpu_custom_call.1} parent=5 // pred_check_branch
        %406 = sbr.rel (%p403) target = $region56
      $region55: #{tpu_custom_call.1} parent=5 // pred_region
        %s407 = ssub.s32 %s24, 1
        %s408 = sand.u32 %s49, 1
        %s409 = scalar_lea.sflag [#allocation5], %s408
        %s410 = sand.u32 %s49, 1
        %s411 = smul.addr %s410, 8
        %s412 = scalar_lea.vmem [#allocation4], %s411
        // Predicated region
        $region57: #{tpu_custom_call.1} parent=55 // pred_check
          %p413 = pneg %p62
        $region58: #{tpu_custom_call.1} parent=55 // pred_check_branch
          %415 = sbr.rel (%p413) target = $region60
        $region59: #{tpu_custom_call.1} parent=55 // pred_region
          %416 = dma.done %s409, 128
        $region60: #{tpu_custom_call.1} parent=55 // pred_fallthru
          _
        %s417 = sand.u32 %s257, 1
        %s418 = scalar_lea.sflag [#allocation8], %s417
        %s419 = sand.u32 %s257, 1
        %s420 = smul.addr %s419, 4
        %s421 = scalar_lea.vmem [#allocation7], %s420
        // Predicated region
        $region61: #{tpu_custom_call.1} parent=55 // pred_check
          %p422 = pneg %p270
        $region62: #{tpu_custom_call.1} parent=55 // pred_check_branch
          %424 = sbr.rel (%p422) target = $region64
        $region63: #{tpu_custom_call.1} parent=55 // pred_region
          %425 = dma.done %s418, 64
        $region64: #{tpu_custom_call.1} parent=55 // pred_fallthru
          _
        %s426 = sand.u32 %s49, 1
        %s427 = scalar_lea.sflag [#allocation5], %s426
        %s428 = sand.u32 %s49, 1
        %s429 = smul.addr %s428, 8
        %s430 = scalar_lea.vmem [#allocation4], %s429
        %p431 = pneg %p62
        %p432 = pneg %p59
        %p433 = scmp.lt.s32.totalorder %s33, 1
        %s434 = scalar_select %p433, %s33, 1
        %s435 = scalar_lea.vmem %s1, %s434
        %p436 = pneg %p88
        %p437 = pneg %p85
        %p438 = scmp.lt.s32.totalorder %s34, 1
        %s439 = scalar_select %p438, %s34, 1
        %s440 = smul.addr %s439, 4
        %s441 = smul.addr %s440, 4
        %s442 = scalar_lea.vmem %s2, %s441
        %p443 = pneg %p114
        %p444 = pneg %p111
        %p445 = scmp.lt.s32.totalorder %s34, 1
        %s446 = scalar_select %p445, %s34, 1
        %s447 = scalar_lea.vmem %s3, %s446
        %p448 = pneg %p140
        %p449 = pneg %p137
        %p450 = scmp.lt.s32.totalorder %s34, 1
        %s451 = scalar_select %p450, %s34, 1
        %s452 = smul.addr %s451, 4
        %s453 = smul.addr %s452, 4
        %s454 = scalar_lea.vmem %s4, %s453
        %p455 = pneg %p166
        %p456 = pneg %p163
        %p457 = scmp.lt.s32.totalorder %s34, 1
        %s458 = scalar_select %p457, %s34, 1
        %s459 = smul.addr %s458, 4
        %s460 = smul.addr %s459, 4
        %s461 = scalar_lea.vmem %s5, %s460
        %p462 = pneg %p192
        %p463 = pneg %p189
        %p464 = scmp.lt.s32.totalorder %s34, 1
        %s465 = scalar_select %p464, %s34, 1
        %s466 = scalar_lea.vmem %s6, %s465
        %p467 = pneg %p218
        %p468 = pneg %p215
        %p469 = scmp.lt.s32.totalorder %s34, 1
        %s470 = scalar_select %p469, %s34, 1
        %s471 = smul.addr %s470, 8
        %s472 = smul.addr %s471, 4
        %s473 = scalar_lea.vmem %s7, %s472
        %p474 = pneg %p244
        %p475 = pneg %p241
        %s476 = sand.u32 %s257, 1
        %s477 = scalar_lea.sflag [#allocation8], %s476
        %s478 = sand.u32 %s257, 1
        %s479 = smul.addr %s478, 4
        %s480 = scalar_lea.vmem [#allocation7], %s479
        %p481 = pneg %p270
        %p482 = pneg %p267
        %p483 = pneg %p296
        %p484 = pneg %p293
        %s485 = sand.u32 %s283, 1
        %s486 = scalar_lea.sflag [#allocation6], %s485
        %s487 = sand.u32 %s283, 1
        %s488 = smul.addr %s487, 8
        %s489 = scalar_lea.vmem [#allocation9], %s488
        %p490 = scmp.lt.s32.totalorder %s33, 1
        %s491 = scalar_select %p490, %s33, 1
        %s492 = scalar_lea.vmem %s1, %s491
        %p493 = scmp.lt.s32.totalorder %s34, 1
        %s494 = scalar_select %p493, %s34, 1
        %s495 = smul.addr %s494, 4
        %s496 = smul.addr %s495, 4
        %s497 = scalar_lea.vmem %s2, %s496
        %p498 = scmp.lt.s32.totalorder %s34, 1
        %s499 = scalar_select %p498, %s34, 1
        %s500 = scalar_lea.vmem %s3, %s499
        %p501 = scmp.lt.s32.totalorder %s34, 1
        %s502 = scalar_select %p501, %s34, 1
        %s503 = smul.addr %s502, 4
        %s504 = smul.addr %s503, 4
        %s505 = scalar_lea.vmem %s4, %s504
        %p506 = scmp.lt.s32.totalorder %s34, 1
        %s507 = scalar_select %p506, %s34, 1
        %s508 = smul.addr %s507, 4
        %s509 = smul.addr %s508, 4
        %s510 = scalar_lea.vmem %s5, %s509
        %p511 = scmp.lt.s32.totalorder %s34, 1
        %s512 = scalar_select %p511, %s34, 1
        %s513 = scalar_lea.vmem %s6, %s512
        %p514 = scmp.lt.s32.totalorder %s34, 1
        %s515 = scalar_select %p514, %s34, 1
        %s516 = smul.addr %s515, 8
        %s517 = smul.addr %s516, 4
        %s518 = scalar_lea.vmem %s7, %s517
        %p520 = scmp.eq.s32.totalorder %s34, 0
        // Predicated region
        $region65: #{tpu_custom_call.1} parent=55 // pred_check
          %p521 = pneg %p520
        $region66: #{tpu_custom_call.1} parent=55 // pred_check_branch
          %523 = sbr.rel (%p521) target = $region68
        $region67: #{tpu_custom_call.1} parent=55 // pred_region
          %v524 = vld [vmem:[%s412] sm:$0xff]
          %vm525 = vcmask 261120
          %526 = vst.msk [vmem:[%s489] sm:$0xff] %vm525, %v524
        $region68: #{tpu_custom_call.1} parent=55 // pred_fallthru
          _
        %v527 = vld [vmem:[%s489] sm:$0xff]
        %v528 = vld [vmem:[%s492] sm:$0x1]
        %v529 = vld [vmem:[%s421] sm:$0xf]
        %v530 = vunpack.c.l.bf16 %v529
        %v531 = vpack.c.bf16 %v527, %v527
        %v532 = vld [vmem:[%s497] sm:$0xf]
        %v533 = vld [vmem:[%s497 + $0x4] sm:$0xf]
        %v534 = vld [vmem:[%s497 + $0x8] sm:$0xf]
        %v535 = vld [vmem:[%s497 + $0xc] sm:$0xf]
        %v536 = vld [vmem:[%s500] sm:$0x1]
        %v537 = vunpack.c.l.bf16 %v536
        %v538 = vlaneseq
        %v539 = vshrl.u32 %v538, 7
        %v540 = vsub.s32 0, %v539
        %v541 = vrot.slane %v537, %v540
        %v546 = vunpack.c.l.b16 %v532
        %v547 = vunpack.c.l.b16 %v533
        %v548 = vunpack.c.l.b16 %v534
        %v549 = vunpack.c.l.b16 %v535
        %v550 = vpack.c.b16 %v547, %v546
        %v551 = vpack.c.b16 %v549, %v548
        %vm554 = vcmask 261120
        %v556 = vsel %vm554, %v531, 0
        %558 = vmatprep.subr.bf16.mxu0 0
        %559 = vmatpush1.bf16.msra.mxu0 %v550
        %560 = vmatprep.subr.bf16.mxu0 0
        %561 = vmatpush1.bf16.msra.mxu0 %v551
        %562 = vmatprep.subr.bf16.mxu0 0
        %563 = vmatpush1.bf16.msra.mxu0 0
        %564 = vmatprep.subr.bf16.mxu0 0
        %565 = vmatpush1.bf16.msra.mxu0 0
        %566 = vmatprep.subr.bf16.mxu0 0
        %567 = vmatpush1.bf16.msra.mxu0 0
        %568 = vmatprep.subr.bf16.mxu0 0
        %569 = vmatpush1.bf16.msra.mxu0 0
        %570 = vmatprep.subr.bf16.mxu0 0
        %571 = vmatpush1.bf16.msra.mxu0 0
        %572 = vmatprep.subr.bf16.mxu0 0
        %573 = vmatpush1.bf16.msra.mxu0 0
        %574 = vmatprep.subr.bf16.mxu0 0
        %575 = vmatpush1.bf16.msra.mxu0 0
        %576 = vmatprep.subr.bf16.mxu0 0
        %577 = vmatpush1.bf16.msra.mxu0 0
        %578 = vmatprep.subr.bf16.mxu0 0
        %579 = vmatpush1.bf16.msra.mxu0 0
        %580 = vmatprep.subr.bf16.mxu0 0
        %581 = vmatpush1.bf16.msra.mxu0 0
        %582 = vmatprep.subr.bf16.mxu0 0
        %583 = vmatpush1.bf16.msra.mxu0 0
        %584 = vmatprep.subr.bf16.mxu0 0
        %585 = vmatpush1.bf16.msra.mxu0 0
        %586 = vmatprep.subr.bf16.mxu0 0
        %587 = vmatpush1.bf16.msra.mxu0 0
        %588 = vmatprep.subr.bf16.mxu0 0
        %589 = vmatpush1.bf16.msra.mxu0 0
        %590 = vmatprep.mubr.bf16.mxu0 0
        %591 = vmatmul.mubr.bf16.gmra.mrb[0].mxu0 %v556
        %v592 = vpop.f32.mrb[0].mxu0
        %v593 = vadd.f32 %v541, %v592
        %v594 = vpop.f32.mrb[0].mxu0
        %v595 = vpop.f32.mrb[0].mxu0
        %v596 = vpop.f32.mrb[0].mxu0
        %597 = vdwg.mxu0
        %v598 = vpack.c.bf16 %v593, %v593
        %vm599 = vcmask 781312
        %600 = vst.msk [vmem:[#allocation2] sm:$0xf] %vm599, %v598
        %v601 = vld [vmem:[#allocation2] sm:$0xf]
        %v603 = vunpack.c.l.b16 %v601
        %v604 = vpack.c.b16 %v603, %v603
        %605 = vrot.lane.b32.xlu0 %v604, 96
        %v606 = vpop.permute.xlu0 %605
        %vm607 = vcmask 64512
        %v609 = vsel %vm607, %v601, 0
        %v612 = vsel %vm607, %v606, 0
        %614 = vmatprep.subr.bf16.mxu0 0
        %615 = vmatpush1.bf16.xpose.msra.mxu0 %v612
        %616 = vmatprep.subr.bf16.mxu0 0
        %617 = vmatpush1.bf16.xpose.msra.mxu0 0
        %618 = vmatprep.subr.bf16.mxu0 0
        %619 = vmatpush1.bf16.xpose.msra.mxu0 0
        %620 = vmatprep.subr.bf16.mxu0 0
        %621 = vmatpush1.bf16.xpose.msra.mxu0 0
        %622 = vmatprep.subr.bf16.mxu0 0
        %623 = vmatpush1.bf16.xpose.msra.mxu0 0
        %624 = vmatprep.subr.bf16.mxu0 0
        %625 = vmatpush1.bf16.xpose.msra.mxu0 0
        %626 = vmatprep.subr.bf16.mxu0 0
        %627 = vmatpush1.bf16.xpose.msra.mxu0 0
        %628 = vmatprep.subr.bf16.mxu0 0
        %629 = vmatpush1.bf16.xpose.msra.mxu0 0
        %630 = vmatprep.subr.bf16.mxu0 0
        %631 = vmatpush1.bf16.xpose.msra.mxu0 0
        %632 = vmatprep.subr.bf16.mxu0 0
        %633 = vmatpush1.bf16.xpose.msra.mxu0 0
        %634 = vmatprep.subr.bf16.mxu0 0
        %635 = vmatpush1.bf16.xpose.msra.mxu0 0
        %636 = vmatprep.subr.bf16.mxu0 0
        %637 = vmatpush1.bf16.xpose.msra.mxu0 0
        %638 = vmatprep.subr.bf16.mxu0 0
        %639 = vmatpush1.bf16.xpose.msra.mxu0 0
        %640 = vmatprep.subr.bf16.mxu0 0
        %641 = vmatpush1.bf16.xpose.msra.mxu0 0
        %642 = vmatprep.subr.bf16.mxu0 0
        %643 = vmatpush1.bf16.xpose.msra.mxu0 0
        %644 = vmatprep.subr.bf16.mxu0 0
        %645 = vmatpush1.bf16.xpose.msra.mxu0 0
        %646 = vmatprep.mubr.bf16.mxu0 0
        %647 = vmatmul.mubr.bf16.gmra.mrb[0].mxu0 %v609
        %v648 = vpop.f32.mrb[0].mxu0
        %v649 = vadd.f32 0.0, %v648
        %v650 = vpop.f32.mrb[0].mxu0
        %v651 = vpop.f32.mrb[0].mxu0
        %v652 = vpop.f32.mrb[0].mxu0
        %653 = vdwg.mxu0
        %v654 = vmul.f32 %v649, 0.35355338
        %v656 = vlaneseq
        %v657 = vshrl.u32 %v656, 7
        %v658 = vsub.s32 0, %v657
        %v659 = vrot.slane %v528, %v658
        %v661 = vadd.f32 %v654, %v659
        %v662 = vsel %vm607, %v661, -inf
        %663 = vmax.xlane.f32.xlu0 %v662
        %v664 = vpop.xlane.xlu0 %663
        %v665 = vsub.f32 %v661, %v664
        %v666 = vmul.f32 %v665, 1.442695
        %v667 = vpow.pop %v666
        %v668 = vsel %vm607, %v667, 0.0
        %669 = vadd.xlane.f32.xlu0 %v668
        %v670 = vpop.xlane.xlu0 %669
        %v671 = vrcp.pop %v670
        %v672 = vmul.f32 %v667, %v671
        %v673 = vpack.c.bf16 %v672, %v672
        %674 = vrot.lane.b32.xlu0 %v604, 64
        %v675 = vpop.permute.xlu0 %674
        %v677 = vsel %vm607, %v673, 0
        %vm679 = vcmask 1043456
        %v681 = vsel %vm679, %v675, 0
        %683 = vmatprep.subr.bf16.mxu0 0
        %684 = vmatpush1.bf16.msra.mxu0 %v681
        %685 = vmatprep.subr.bf16.mxu0 0
        %686 = vmatpush1.bf16.msra.mxu0 0
        %687 = vmatprep.subr.bf16.mxu0 0
        %688 = vmatpush1.bf16.msra.mxu0 0
        %689 = vmatprep.subr.bf16.mxu0 0
        %690 = vmatpush1.bf16.msra.mxu0 0
        %691 = vmatprep.subr.bf16.mxu0 0
        %692 = vmatpush1.bf16.msra.mxu0 0
        %693 = vmatprep.subr.bf16.mxu0 0
        %694 = vmatpush1.bf16.msra.mxu0 0
        %695 = vmatprep.subr.bf16.mxu0 0
        %696 = vmatpush1.bf16.msra.mxu0 0
        %697 = vmatprep.subr.bf16.mxu0 0
        %698 = vmatpush1.bf16.msra.mxu0 0
        %699 = vmatprep.subr.bf16.mxu0 0
        %700 = vmatpush1.bf16.msra.mxu0 0
        %701 = vmatprep.subr.bf16.mxu0 0
        %702 = vmatpush1.bf16.msra.mxu0 0
        %703 = vmatprep.subr.bf16.mxu0 0
        %704 = vmatpush1.bf16.msra.mxu0 0
        %705 = vmatprep.subr.bf16.mxu0 0
        %706 = vmatpush1.bf16.msra.mxu0 0
        %707 = vmatprep.subr.bf16.mxu0 0
        %708 = vmatpush1.bf16.msra.mxu0 0
        %709 = vmatprep.subr.bf16.mxu0 0
        %710 = vmatpush1.bf16.msra.mxu0 0
        %711 = vmatprep.subr.bf16.mxu0 0
        %712 = vmatpush1.bf16.msra.mxu0 0
        %713 = vmatprep.subr.bf16.mxu0 0
        %714 = vmatpush1.bf16.msra.mxu0 0
        %715 = vmatprep.mubr.bf16.mxu0 0
        %716 = vmatmul.mubr.bf16.gmra.mrb[0].mxu0 %v677
        %v717 = vpop.f32.mrb[0].mxu0
        %v718 = vadd.f32 0.0, %v717
        %v719 = vpop.f32.mrb[0].mxu0
        %v720 = vpop.f32.mrb[0].mxu0
        %v721 = vpop.f32.mrb[0].mxu0
        %722 = vdwg.mxu0
        %v723 = vpack.c.bf16 %v718, %v718
        %vm724 = vcmask 60416
        %725 = vst.msk [vmem:[#allocation3] sm:$0xf] %vm724, %v723
        %v726 = vld [vmem:[#allocation2] sm:$0xf]
        %v728 = vunpack.c.l.b16 %v726
        %v729 = vpack.c.b16 %v728, %v728
        %730 = vrot.lane.b32.xlu0 %v729, 120
        %v731 = vpop.permute.xlu0 %730
        %732 = vrot.lane.b32.xlu0 %v729, 88
        %v733 = vpop.permute.xlu0 %732
        %v735 = vsel %vm607, %v731, 0
        %v738 = vsel %vm607, %v733, 0
        %740 = vmatprep.subr.bf16.mxu0 0
        %741 = vmatpush1.bf16.xpose.msra.mxu0 %v738
        %742 = vmatprep.subr.bf16.mxu0 0
        %743 = vmatpush1.bf16.xpose.msra.mxu0 0
        %744 = vmatprep.subr.bf16.mxu0 0
        %745 = vmatpush1.bf16.xpose.msra.mxu0 0
        %746 = vmatprep.subr.bf16.mxu0 0
        %747 = vmatpush1.bf16.xpose.msra.mxu0 0
        %748 = vmatprep.subr.bf16.mxu0 0
        %749 = vmatpush1.bf16.xpose.msra.mxu0 0
        %750 = vmatprep.subr.bf16.mxu0 0
        %751 = vmatpush1.bf16.xpose.msra.mxu0 0
        %752 = vmatprep.subr.bf16.mxu0 0
        %753 = vmatpush1.bf16.xpose.msra.mxu0 0
        %754 = vmatprep.subr.bf16.mxu0 0
        %755 = vmatpush1.bf16.xpose.msra.mxu0 0
        %756 = vmatprep.subr.bf16.mxu0 0
        %757 = vmatpush1.bf16.xpose.msra.mxu0 0
        %758 = vmatprep.subr.bf16.mxu0 0
        %759 = vmatpush1.bf16.xpose.msra.mxu0 0
        %760 = vmatprep.subr.bf16.mxu0 0
        %761 = vmatpush1.bf16.xpose.msra.mxu0 0
        %762 = vmatprep.subr.bf16.mxu0 0
        %763 = vmatpush1.bf16.xpose.msra.mxu0 0
        %764 = vmatprep.subr.bf16.mxu0 0
        %765 = vmatpush1.bf16.xpose.msra.mxu0 0
        %766 = vmatprep.subr.bf16.mxu0 0
        %767 = vmatpush1.bf16.xpose.msra.mxu0 0
        %768 = vmatprep.subr.bf16.mxu0 0
        %769 = vmatpush1.bf16.xpose.msra.mxu0 0
        %770 = vmatprep.subr.bf16.mxu0 0
        %771 = vmatpush1.bf16.xpose.msra.mxu0 0
        %772 = vmatprep.mubr.bf16.mxu0 0
        %773 = vmatmul.mubr.bf16.gmra.mrb[0].mxu0 %v735
        %v774 = vpop.f32.mrb[0].mxu0
        %v775 = vadd.f32 0.0, %v774
        %v776 = vpop.f32.mrb[0].mxu0
        %v777 = vpop.f32.mrb[0].mxu0
        %v778 = vpop.f32.mrb[0].mxu0
        %779 = vdwg.mxu0
        %v780 = vmul.f32 %v775, 0.35355338
        %v781 = vadd.f32 %v780, %v659
        %v782 = vsel %vm607, %v781, -inf
        %783 = vmax.xlane.f32.xlu0 %v782
        %v784 = vpop.xlane.xlu0 %783
        %v785 = vsub.f32 %v781, %v784
        %v786 = vmul.f32 %v785, 1.442695
        %v787 = vpow.pop %v786
        %v788 = vsel %vm607, %v787, 0.0
        %789 = vadd.xlane.f32.xlu0 %v788
        %v790 = vpop.xlane.xlu0 %789
        %v791 = vrcp.pop %v790
        %v792 = vmul.f32 %v787, %v791
        %v793 = vpack.c.bf16 %v792, %v792
        %794 = vrot.lane.b32.xlu0 %v729, 56
        %v795 = vpop.permute.xlu0 %794
        %v797 = vsel %vm607, %v793, 0
        %v800 = vsel %vm679, %v795, 0
        %802 = vmatprep.subr.bf16.mxu0 0
        %803 = vmatpush1.bf16.msra.mxu0 %v800
        %804 = vmatprep.subr.bf16.mxu0 0
        %805 = vmatpush1.bf16.msra.mxu0 0
        %806 = vmatprep.subr.bf16.mxu0 0
        %807 = vmatpush1.bf16.msra.mxu0 0
        %808 = vmatprep.subr.bf16.mxu0 0
        %809 = vmatpush1.bf16.msra.mxu0 0
        %810 = vmatprep.subr.bf16.mxu0 0
        %811 = vmatpush1.bf16.msra.mxu0 0
        %812 = vmatprep.subr.bf16.mxu0 0
        %813 = vmatpush1.bf16.msra.mxu0 0
        %814 = vmatprep.subr.bf16.mxu0 0
        %815 = vmatpush1.bf16.msra.mxu0 0
        %816 = vmatprep.subr.bf16.mxu0 0
        %817 = vmatpush1.bf16.msra.mxu0 0
        %818 = vmatprep.subr.bf16.mxu0 0
        %819 = vmatpush1.bf16.msra.mxu0 0
        %820 = vmatprep.subr.bf16.mxu0 0
        %821 = vmatpush1.bf16.msra.mxu0 0
        %822 = vmatprep.subr.bf16.mxu0 0
        %823 = vmatpush1.bf16.msra.mxu0 0
        %824 = vmatprep.subr.bf16.mxu0 0
        %825 = vmatpush1.bf16.msra.mxu0 0
        %826 = vmatprep.subr.bf16.mxu0 0
        %827 = vmatpush1.bf16.msra.mxu0 0
        %828 = vmatprep.subr.bf16.mxu0 0
        %829 = vmatpush1.bf16.msra.mxu0 0
        %830 = vmatprep.subr.bf16.mxu0 0
        %831 = vmatpush1.bf16.msra.mxu0 0
        %832 = vmatprep.subr.bf16.mxu0 0
        %833 = vmatpush1.bf16.msra.mxu0 0
        %834 = vmatprep.mubr.bf16.mxu0 0
        %835 = vmatmul.mubr.bf16.gmra.mrb[0].mxu0 %v797
        %v836 = vpop.f32.mrb[0].mxu0
        %v837 = vadd.f32 0.0, %v836
        %v838 = vpop.f32.mrb[0].mxu0
        %v839 = vpop.f32.mrb[0].mxu0
        %v840 = vpop.f32.mrb[0].mxu0
        %841 = vdwg.mxu0
        %v842 = vpack.c.bf16 %v837, %v837
        %v844 = vunpack.c.l.b16 %v842
        %v845 = vpack.c.b16 %v844, %v844
        %846 = vrot.lane.b32.xlu0 %v845, 8
        %v847 = vpop.permute.xlu0 %846
        %vm849 = vcmask 126016
        %850 = vst.msk [vmem:[#allocation3] sm:$0xf] %vm849, %v847
        %v851 = vld [vmem:[#allocation2] sm:$0xf]
        %v853 = vunpack.c.l.b16 %v851
        %v854 = vpack.c.b16 %v853, %v853
        %855 = vrot.lane.b32.xlu0 %v854, 112
        %v856 = vpop.permute.xlu0 %855
        %857 = vrot.lane.b32.xlu0 %v854, 80
        %v858 = vpop.permute.xlu0 %857
        %v860 = vsel %vm607, %v856, 0
        %v863 = vsel %vm607, %v858, 0
        %865 = vmatprep.subr.bf16.mxu0 0
        %866 = vmatpush1.bf16.xpose.msra.mxu0 %v863
        %867 = vmatprep.subr.bf16.mxu0 0
        %868 = vmatpush1.bf16.xpose.msra.mxu0 0
        %869 = vmatprep.subr.bf16.mxu0 0
        %870 = vmatpush1.bf16.xpose.msra.mxu0 0
        %871 = vmatprep.subr.bf16.mxu0 0
        %872 = vmatpush1.bf16.xpose.msra.mxu0 0
        %873 = vmatprep.subr.bf16.mxu0 0
        %874 = vmatpush1.bf16.xpose.msra.mxu0 0
        %875 = vmatprep.subr.bf16.mxu0 0
        %876 = vmatpush1.bf16.xpose.msra.mxu0 0
        %877 = vmatprep.subr.bf16.mxu0 0
        %878 = vmatpush1.bf16.xpose.msra.mxu0 0
        %879 = vmatprep.subr.bf16.mxu0 0
        %880 = vmatpush1.bf16.xpose.msra.mxu0 0
        %881 = vmatprep.subr.bf16.mxu0 0
        %882 = vmatpush1.bf16.xpose.msra.mxu0 0
        %883 = vmatprep.subr.bf16.mxu0 0
        %884 = vmatpush1.bf16.xpose.msra.mxu0 0
        %885 = vmatprep.subr.bf16.mxu0 0
        %886 = vmatpush1.bf16.xpose.msra.mxu0 0
        %887 = vmatprep.subr.bf16.mxu0 0
        %888 = vmatpush1.bf16.xpose.msra.mxu0 0
        %889 = vmatprep.subr.bf16.mxu0 0
        %890 = vmatpush1.bf16.xpose.msra.mxu0 0
        %891 = vmatprep.subr.bf16.mxu0 0
        %892 = vmatpush1.bf16.xpose.msra.mxu0 0
        %893 = vmatprep.subr.bf16.mxu0 0
        %894 = vmatpush1.bf16.xpose.msra.mxu0 0
        %895 = vmatprep.subr.bf16.mxu0 0
        %896 = vmatpush1.bf16.xpose.msra.mxu0 0
        %897 = vmatprep.mubr.bf16.mxu0 0
        %898 = vmatmul.mubr.bf16.gmra.mrb[0].mxu0 %v860
        %v899 = vpop.f32.mrb[0].mxu0
        %v900 = vadd.f32 0.0, %v899
        %v901 = vpop.f32.mrb[0].mxu0
        %v902 = vpop.f32.mrb[0].mxu0
        %v903 = vpop.f32.mrb[0].mxu0
        %904 = vdwg.mxu0
        %v905 = vmul.f32 %v900, 0.35355338
        %v906 = vadd.f32 %v905, %v659
        %v907 = vsel %vm607, %v906, -inf
        %908 = vmax.xlane.f32.xlu0 %v907
        %v909 = vpop.xlane.xlu0 %908
        %v910 = vsub.f32 %v906, %v909
        %v911 = vmul.f32 %v910, 1.442695
        %v912 = vpow.pop %v911
        %v913 = vsel %vm607, %v912, 0.0
        %914 = vadd.xlane.f32.xlu0 %v913
        %v915 = vpop.xlane.xlu0 %914
        %v916 = vrcp.pop %v915
        %v917 = vmul.f32 %v912, %v916
        %v918 = vpack.c.bf16 %v917, %v917
        %919 = vrot.lane.b32.xlu0 %v854, 48
        %v920 = vpop.permute.xlu0 %919
        %v922 = vsel %vm607, %v918, 0
        %v925 = vsel %vm679, %v920, 0
        %927 = vmatprep.subr.bf16.mxu0 0
        %928 = vmatpush1.bf16.msra.mxu0 %v925
        %929 = vmatprep.subr.bf16.mxu0 0
        %930 = vmatpush1.bf16.msra.mxu0 0
        %931 = vmatprep.subr.bf16.mxu0 0
        %932 = vmatpush1.bf16.msra.mxu0 0
        %933 = vmatprep.subr.bf16.mxu0 0
        %934 = vmatpush1.bf16.msra.mxu0 0
        %935 = vmatprep.subr.bf16.mxu0 0
        %936 = vmatpush1.bf16.msra.mxu0 0
        %937 = vmatprep.subr.bf16.mxu0 0
        %938 = vmatpush1.bf16.msra.mxu0 0
        %939 = vmatprep.subr.bf16.mxu0 0
        %940 = vmatpush1.bf16.msra.mxu0 0
        %941 = vmatprep.subr.bf16.mxu0 0
        %942 = vmatpush1.bf16.msra.mxu0 0
        %943 = vmatprep.subr.bf16.mxu0 0
        %944 = vmatpush1.bf16.msra.mxu0 0
        %945 = vmatprep.subr.bf16.mxu0 0
        %946 = vmatpush1.bf16.msra.mxu0 0
        %947 = vmatprep.subr.bf16.mxu0 0
        %948 = vmatpush1.bf16.msra.mxu0 0
        %949 = vmatprep.subr.bf16.mxu0 0
        %950 = vmatpush1.bf16.msra.mxu0 0
        %951 = vmatprep.subr.bf16.mxu0 0
        %952 = vmatpush1.bf16.msra.mxu0 0
        %953 = vmatprep.subr.bf16.mxu0 0
        %954 = vmatpush1.bf16.msra.mxu0 0
        %955 = vmatprep.subr.bf16.mxu0 0
        %956 = vmatpush1.bf16.msra.mxu0 0
        %957 = vmatprep.subr.bf16.mxu0 0
        %958 = vmatpush1.bf16.msra.mxu0 0
        %959 = vmatprep.mubr.bf16.mxu0 0
        %960 = vmatmul.mubr.bf16.gmra.mrb[0].mxu0 %v922
        %v961 = vpop.f32.mrb[0].mxu0
        %v962 = vadd.f32 0.0, %v961
        %v963 = vpop.f32.mrb[0].mxu0
        %v964 = vpop.f32.mrb[0].mxu0
        %v965 = vpop.f32.mrb[0].mxu0
        %966 = vdwg.mxu0
        %v967 = vpack.c.bf16 %v962, %v962
        %v969 = vunpack.c.l.b16 %v967
        %v970 = vpack.c.b16 %v969, %v969
        %971 = vrot.lane.b32.xlu0 %v970, 16
        %v972 = vpop.permute.xlu0 %971
        %vm974 = vcmask 191616
        %975 = vst.msk [vmem:[#allocation3] sm:$0xf] %vm974, %v972
        %v976 = vld [vmem:[#allocation2] sm:$0xf]
        %v978 = vunpack.c.l.b16 %v976
        %v979 = vpack.c.b16 %v978, %v978
        %980 = vrot.lane.b32.xlu0 %v979, 104
        %v981 = vpop.permute.xlu0 %980
        %982 = vrot.lane.b32.xlu0 %v979, 72
        %v983 = vpop.permute.xlu0 %982
        %v985 = vsel %vm607, %v981, 0
        %v988 = vsel %vm607, %v983, 0
        %990 = vmatprep.subr.bf16.mxu0 0
        %991 = vmatpush1.bf16.xpose.msra.mxu0 %v988
        %992 = vmatprep.subr.bf16.mxu0 0
        %993 = vmatpush1.bf16.xpose.msra.mxu0 0
        %994 = vmatprep.subr.bf16.mxu0 0
        %995 = vmatpush1.bf16.xpose.msra.mxu0 0
        %996 = vmatprep.subr.bf16.mxu0 0
        %997 = vmatpush1.bf16.xpose.msra.mxu0 0
        %998 = vmatprep.subr.bf16.mxu0 0
        %999 = vmatpush1.bf16.xpose.msra.mxu0 0
        %1000 = vmatprep.subr.bf16.mxu0 0
        %1001 = vmatpush1.bf16.xpose.msra.mxu0 0
        %1002 = vmatprep.subr.bf16.mxu0 0
        %1003 = vmatpush1.bf16.xpose.msra.mxu0 0
        %1004 = vmatprep.subr.bf16.mxu0 0
        %1005 = vmatpush1.bf16.xpose.msra.mxu0 0
        %1006 = vmatprep.subr.bf16.mxu0 0
        %1007 = vmatpush1.bf16.xpose.msra.mxu0 0
        %1008 = vmatprep.subr.bf16.mxu0 0
        %1009 = vmatpush1.bf16.xpose.msra.mxu0 0
        %1010 = vmatprep.subr.bf16.mxu0 0
        %1011 = vmatpush1.bf16.xpose.msra.mxu0 0
        %1012 = vmatprep.subr.bf16.mxu0 0
        %1013 = vmatpush1.bf16.xpose.msra.mxu0 0
        %1014 = vmatprep.subr.bf16.mxu0 0
        %1015 = vmatpush1.bf16.xpose.msra.mxu0 0
        %1016 = vmatprep.subr.bf16.mxu0 0
        %1017 = vmatpush1.bf16.xpose.msra.mxu0 0
        %1018 = vmatprep.subr.bf16.mxu0 0
        %1019 = vmatpush1.bf16.xpose.msra.mxu0 0
        %1020 = vmatprep.subr.bf16.mxu0 0
        %1021 = vmatpush1.bf16.xpose.msra.mxu0 0
        %1022 = vmatprep.mubr.bf16.mxu0 0
        %1023 = vmatmul.mubr.bf16.gmra.mrb[0].mxu0 %v985
        %v1024 = vpop.f32.mrb[0].mxu0
        %v1025 = vadd.f32 0.0, %v1024
        %v1026 = vpop.f32.mrb[0].mxu0
        %v1027 = vpop.f32.mrb[0].mxu0
        %v1028 = vpop.f32.mrb[0].mxu0
        %1029 = vdwg.mxu0
        %v1030 = vmul.f32 %v1025, 0.35355338
        %v1031 = vadd.f32 %v1030, %v659
        %v1032 = vsel %vm607, %v1031, -inf
        %1033 = vmax.xlane.f32.xlu0 %v1032
        %v1034 = vpop.xlane.xlu0 %1033
        %v1035 = vsub.f32 %v1031, %v1034
        %v1036 = vmul.f32 %v1035, 1.442695
        %v1037 = vpow.pop %v1036
        %v1038 = vsel %vm607, %v1037, 0.0
        %1039 = vadd.xlane.f32.xlu0 %v1038
        %v1040 = vpop.xlane.xlu0 %1039
        %v1041 = vrcp.pop %v1040
        %v1042 = vmul.f32 %v1037, %v1041
        %v1043 = vpack.c.bf16 %v1042, %v1042
        %1044 = vrot.lane.b32.xlu0 %v979, 40
        %v1045 = vpop.permute.xlu0 %1044
        %v1047 = vsel %vm607, %v1043, 0
        %v1050 = vsel %vm679, %v1045, 0
        %1052 = vmatprep.subr.bf16.mxu0 0
        %1053 = vmatpush1.bf16.msra.mxu0 %v1050
        %1054 = vmatprep.subr.bf16.mxu0 0
        %1055 = vmatpush1.bf16.msra.mxu0 0
        %1056 = vmatprep.subr.bf16.mxu0 0
        %1057 = vmatpush1.bf16.msra.mxu0 0
        %1058 = vmatprep.subr.bf16.mxu0 0
        %1059 = vmatpush1.bf16.msra.mxu0 0
        %1060 = vmatprep.subr.bf16.mxu0 0
        %1061 = vmatpush1.bf16.msra.mxu0 0
        %1062 = vmatprep.subr.bf16.mxu0 0
        %1063 = vmatpush1.bf16.msra.mxu0 0
        %1064 = vmatprep.subr.bf16.mxu0 0
        %1065 = vmatpush1.bf16.msra.mxu0 0
        %1066 = vmatprep.subr.bf16.mxu0 0
        %1067 = vmatpush1.bf16.msra.mxu0 0
        %1068 = vmatprep.subr.bf16.mxu0 0
        %1069 = vmatpush1.bf16.msra.mxu0 0
        %1070 = vmatprep.subr.bf16.mxu0 0
        %1071 = vmatpush1.bf16.msra.mxu0 0
        %1072 = vmatprep.subr.bf16.mxu0 0
        %1073 = vmatpush1.bf16.msra.mxu0 0
        %1074 = vmatprep.subr.bf16.mxu0 0
        %1075 = vmatpush1.bf16.msra.mxu0 0
        %1076 = vmatprep.subr.bf16.mxu0 0
        %1077 = vmatpush1.bf16.msra.mxu0 0
        %1078 = vmatprep.subr.bf16.mxu0 0
        %1079 = vmatpush1.bf16.msra.mxu0 0
        %1080 = vmatprep.subr.bf16.mxu0 0
        %1081 = vmatpush1.bf16.msra.mxu0 0
        %1082 = vmatprep.subr.bf16.mxu0 0
        %1083 = vmatpush1.bf16.msra.mxu0 0
        %1084 = vmatprep.mubr.bf16.mxu0 0
        %1085 = vmatmul.mubr.bf16.gmra.mrb[0].mxu0 %v1047
        %v1086 = vpop.f32.mrb[0].mxu0
        %v1087 = vadd.f32 0.0, %v1086
        %v1088 = vpop.f32.mrb[0].mxu0
        %v1089 = vpop.f32.mrb[0].mxu0
        %v1090 = vpop.f32.mrb[0].mxu0
        %1091 = vdwg.mxu0
        %v1092 = vpack.c.bf16 %v1087, %v1087
        %v1094 = vunpack.c.l.b16 %v1092
        %v1095 = vpack.c.b16 %v1094, %v1094
        %1096 = vrot.lane.b32.xlu0 %v1095, 24
        %v1097 = vpop.permute.xlu0 %1096
        %vm1099 = vcmask 257216
        %1100 = vst.msk [vmem:[#allocation3] sm:$0xf] %vm1099, %v1097
        %v1101 = vld [vmem:[#allocation3] sm:$0xf]
        %v1102 = vld [vmem:[%s505] sm:$0xf]
        %v1103 = vld [vmem:[%s505 + $0x4] sm:$0xf]
        %v1104 = vld [vmem:[%s505 + $0x8] sm:$0xf]
        %v1105 = vld [vmem:[%s505 + $0xc] sm:$0xf]
        %v1106 = vlaneseq
        %v1107 = vshrl.u32 %v1106, 7
        %v1108 = vsub.s32 0, %v1107
        %v1109 = vrot.slane %v530, %v1108
        %v1114 = vunpack.c.l.b16 %v1102
        %v1115 = vunpack.c.l.b16 %v1103
        %v1116 = vunpack.c.l.b16 %v1104
        %v1117 = vunpack.c.l.b16 %v1105
        %v1118 = vpack.c.b16 %v1115, %v1114
        %v1119 = vpack.c.b16 %v1117, %v1116
        %v1123 = vsel %vm554, %v1101, 0
        %1125 = vmatprep.subr.bf16.mxu0 0
        %1126 = vmatpush1.bf16.msra.mxu0 %v1118
        %1127 = vmatprep.subr.bf16.mxu0 0
        %1128 = vmatpush1.bf16.msra.mxu0 %v1119
        %1129 = vmatprep.subr.bf16.mxu0 0
        %1130 = vmatpush1.bf16.msra.mxu0 0
        %1131 = vmatprep.subr.bf16.mxu0 0
        %1132 = vmatpush1.bf16.msra.mxu0 0
        %1133 = vmatprep.subr.bf16.mxu0 0
        %1134 = vmatpush1.bf16.msra.mxu0 0
        %1135 = vmatprep.subr.bf16.mxu0 0
        %1136 = vmatpush1.bf16.msra.mxu0 0
        %1137 = vmatprep.subr.bf16.mxu0 0
        %1138 = vmatpush1.bf16.msra.mxu0 0
        %1139 = vmatprep.subr.bf16.mxu0 0
        %1140 = vmatpush1.bf16.msra.mxu0 0
        %1141 = vmatprep.subr.bf16.mxu0 0
        %1142 = vmatpush1.bf16.msra.mxu0 0
        %1143 = vmatprep.subr.bf16.mxu0 0
        %1144 = vmatpush1.bf16.msra.mxu0 0
        %1145 = vmatprep.subr.bf16.mxu0 0
        %1146 = vmatpush1.bf16.msra.mxu0 0
        %1147 = vmatprep.subr.bf16.mxu0 0
        %1148 = vmatpush1.bf16.msra.mxu0 0
        %1149 = vmatprep.subr.bf16.mxu0 0
        %1150 = vmatpush1.bf16.msra.mxu0 0
        %1151 = vmatprep.subr.bf16.mxu0 0
        %1152 = vmatpush1.bf16.msra.mxu0 0
        %1153 = vmatprep.subr.bf16.mxu0 0
        %1154 = vmatpush1.bf16.msra.mxu0 0
        %1155 = vmatprep.subr.bf16.mxu0 0
        %1156 = vmatpush1.bf16.msra.mxu0 0
        %1157 = vmatprep.mubr.bf16.mxu0 0
        %1158 = vmatmul.mubr.bf16.gmra.mrb[0].mxu0 %v1123
        %v1159 = vpop.f32.mrb[0].mxu0
        %v1160 = vadd.f32 %v1109, %v1159
        %v1161 = vpop.f32.mrb[0].mxu0
        %v1162 = vpop.f32.mrb[0].mxu0
        %v1163 = vpop.f32.mrb[0].mxu0
        %1164 = vdwg.mxu0
        %v1165 = vadd.f32 %v1160, %v527
        %v1166 = vsel %vm554, %v1165, 0.0
        %1167 = vadd.xlane.f32.xlu0 %v1166
        %v1168 = vpop.xlane.xlu0 %1167
        %v1169 = vrcp.pop 32.0
        %v1170 = vmul.f32 %v1168, %v1169
        %v1171 = vsub.f32 %v1165, %v1170
        %v1172 = vmul.f32 %v1171, %v1171
        %v1173 = vsel %vm554, %v1172, 0.0
        %1174 = vadd.xlane.f32.xlu0 %v1173
        %v1175 = vpop.xlane.xlu0 %1174
        %v1176 = vmul.f32 %v1175, 0.032258064
        %v1177 = vrsqrt.pop %v1176
        %v1178 = vmul.f32 %v1176, %v1177
        %vm1179 = vcmp.eq.f32.partialorder %v1176, inf
        %v1180 = vsel %vm1179, %v1176, %v1178
        %vm1181 = vcmp.eq.f32.partialorder %v1176, 0.0
        %v1182 = vand.u32 %v1176, 2147483648
        %v1183 = vsel %vm1181, %v1182, %v1180
        %v1184 = vadd.f32 %v1183, 1e-06
        %v1185 = vrcp.pop %v1184
        %v1186 = vmul.f32 1.0, %v1185
        %v1187 = vmul.f32 %v1171, %v1186
        %v1188 = vlaneseq
        %v1189 = vshrl.u32 %v1188, 7
        %v1190 = vsub.s32 1, %v1189
        %v1191 = vrot.slane %v530, %v1190
        %v1192 = vmul.f32 %v1191, %v1187
        %v1193 = vlaneseq
        %v1194 = vshrl.u32 %v1193, 7
        %v1195 = vsub.s32 2, %v1194
        %v1196 = vrot.slane %v530, %v1195
        %v1197 = vadd.f32 %v1192, %v1196
        %v1198 = vpack.c.bf16 %v1197, %v1197
        %v1199 = vld [vmem:[%s510] sm:$0xf]
        %v1200 = vld [vmem:[%s510 + $0x4] sm:$0xf]
        %v1201 = vld [vmem:[%s510 + $0x8] sm:$0xf]
        %v1202 = vld [vmem:[%s510 + $0xc] sm:$0xf]
        %v1203 = vld [vmem:[%s513] sm:$0x1]
        %v1204 = vunpack.c.l.bf16 %v1203
        %v1205 = vlaneseq
        %v1206 = vshrl.u32 %v1205, 7
        %v1207 = vsub.s32 0, %v1206
        %v1208 = vrot.slane %v1204, %v1207
        %v1213 = vunpack.c.l.b16 %v1199
        %v1214 = vunpack.c.l.b16 %v1200
        %v1215 = vunpack.c.l.b16 %v1201
        %v1216 = vunpack.c.l.b16 %v1202
        %v1217 = vpack.c.b16 %v1214, %v1213
        %v1218 = vpack.c.b16 %v1216, %v1215
        %v1222 = vsel %vm554, %v1198, 0
        %1224 = vmatprep.subr.bf16.mxu0 0
        %1225 = vmatpush1.bf16.msra.mxu0 %v1217
        %1226 = vmatprep.subr.bf16.mxu0 0
        %1227 = vmatpush1.bf16.msra.mxu0 %v1218
        %1228 = vmatprep.subr.bf16.mxu0 0
        %1229 = vmatpush1.bf16.msra.mxu0 0
        %1230 = vmatprep.subr.bf16.mxu0 0
        %1231 = vmatpush1.bf16.msra.mxu0 0
        %1232 = vmatprep.subr.bf16.mxu0 0
        %1233 = vmatpush1.bf16.msra.mxu0 0
        %1234 = vmatprep.subr.bf16.mxu0 0
        %1235 = vmatpush1.bf16.msra.mxu0 0
        %1236 = vmatprep.subr.bf16.mxu0 0
        %1237 = vmatpush1.bf16.msra.mxu0 0
        %1238 = vmatprep.subr.bf16.mxu0 0
        %1239 = vmatpush1.bf16.msra.mxu0 0
        %1240 = vmatprep.subr.bf16.mxu0 0
        %1241 = vmatpush1.bf16.msra.mxu0 0
        %1242 = vmatprep.subr.bf16.mxu0 0
        %1243 = vmatpush1.bf16.msra.mxu0 0
        %1244 = vmatprep.subr.bf16.mxu0 0
        %1245 = vmatpush1.bf16.msra.mxu0 0
        %1246 = vmatprep.subr.bf16.mxu0 0
        %1247 = vmatpush1.bf16.msra.mxu0 0
        %1248 = vmatprep.subr.bf16.mxu0 0
        %1249 = vmatpush1.bf16.msra.mxu0 0
        %1250 = vmatprep.subr.bf16.mxu0 0
        %1251 = vmatpush1.bf16.msra.mxu0 0
        %1252 = vmatprep.subr.bf16.mxu0 0
        %1253 = vmatpush1.bf16.msra.mxu0 0
        %1254 = vmatprep.subr.bf16.mxu0 0
        %1255 = vmatpush1.bf16.msra.mxu0 0
        %1256 = vmatprep.mubr.bf16.mxu0 0
        %1257 = vmatmul.mubr.bf16.gmra.mrb[0].mxu0 %v1222
        %v1258 = vpop.f32.mrb[0].mxu0
        %v1259 = vadd.f32 %v1208, %v1258
        %v1260 = vpop.f32.mrb[0].mxu0
        %v1261 = vpop.f32.mrb[0].mxu0
        %v1262 = vpop.f32.mrb[0].mxu0
        %1263 = vdwg.mxu0
        %v1264 = vmul.f32 %v1259, 0.5
        %v1265 = vmul.f32 %v1259, 0.70710677
        %v1266 = verf.f32.pop %v1265
        %v1267 = vadd.f32 %v1266, 1.0
        %v1268 = vmul.f32 %v1264, %v1267
        %v1269 = vpack.c.bf16 %v1268, %v1268
        %v1270 = vld [vmem:[%s518] sm:$0xf]
        %v1271 = vld [vmem:[%s518 + $0x4] sm:$0xf]
        %v1272 = vld [vmem:[%s518 + $0x8] sm:$0xf]
        %v1273 = vld [vmem:[%s518 + $0xc] sm:$0xf]
        %v1274 = vld [vmem:[%s518 + $0x10] sm:$0xf]
        %v1275 = vld [vmem:[%s518 + $0x14] sm:$0xf]
        %v1276 = vld [vmem:[%s518 + $0x18] sm:$0xf]
        %v1277 = vld [vmem:[%s518 + $0x1c] sm:$0xf]
        %v1278 = vlaneseq
        %v1279 = vshrl.u32 %v1278, 7
        %v1280 = vsub.s32 3, %v1279
        %v1281 = vrot.slane %v530, %v1280
        %v1290 = vunpack.c.l.b16 %v1270
        %v1291 = vunpack.c.l.b16 %v1271
        %v1292 = vunpack.c.l.b16 %v1272
        %v1293 = vunpack.c.l.b16 %v1273
        %v1294 = vunpack.c.l.b16 %v1274
        %v1295 = vunpack.c.l.b16 %v1275
        %v1296 = vunpack.c.l.b16 %v1276
        %v1297 = vunpack.c.l.b16 %v1277
        %v1298 = vpack.c.b16 %v1291, %v1290
        %v1299 = vpack.c.b16 %v1293, %v1292
        %v1300 = vpack.c.b16 %v1295, %v1294
        %v1301 = vpack.c.b16 %v1297, %v1296
        %vm1306 = vcmask 523264
        %v1308 = vsel %vm1306, %v1269, 0
        %1310 = vmatprep.subr.bf16.mxu0 0
        %1311 = vmatpush1.bf16.msra.mxu0 %v1298
        %1312 = vmatprep.subr.bf16.mxu0 0
        %1313 = vmatpush1.bf16.msra.mxu0 %v1299
        %1314 = vmatprep.subr.bf16.mxu0 0
        %1315 = vmatpush1.bf16.msra.mxu0 %v1300
        %1316 = vmatprep.subr.bf16.mxu0 0
        %1317 = vmatpush1.bf16.msra.mxu0 %v1301
        %1318 = vmatprep.subr.bf16.mxu0 0
        %1319 = vmatpush1.bf16.msra.mxu0 0
        %1320 = vmatprep.subr.bf16.mxu0 0
        %1321 = vmatpush1.bf16.msra.mxu0 0
        %1322 = vmatprep.subr.bf16.mxu0 0
        %1323 = vmatpush1.bf16.msra.mxu0 0
        %1324 = vmatprep.subr.bf16.mxu0 0
        %1325 = vmatpush1.bf16.msra.mxu0 0
        %1326 = vmatprep.subr.bf16.mxu0 0
        %1327 = vmatpush1.bf16.msra.mxu0 0
        %1328 = vmatprep.subr.bf16.mxu0 0
        %1329 = vmatpush1.bf16.msra.mxu0 0
        %1330 = vmatprep.subr.bf16.mxu0 0
        %1331 = vmatpush1.bf16.msra.mxu0 0
        %1332 = vmatprep.subr.bf16.mxu0 0
        %1333 = vmatpush1.bf16.msra.mxu0 0
        %1334 = vmatprep.subr.bf16.mxu0 0
        %1335 = vmatpush1.bf16.msra.mxu0 0
        %1336 = vmatprep.subr.bf16.mxu0 0
        %1337 = vmatpush1.bf16.msra.mxu0 0
        %1338 = vmatprep.subr.bf16.mxu0 0
        %1339 = vmatpush1.bf16.msra.mxu0 0
        %1340 = vmatprep.subr.bf16.mxu0 0
        %1341 = vmatpush1.bf16.msra.mxu0 0
        %1342 = vmatprep.mubr.bf16.mxu0 0
        %1343 = vmatmul.mubr.bf16.gmra.mrb[0].mxu0 %v1308
        %v1344 = vpop.f32.mrb[0].mxu0
        %v1345 = vadd.f32 %v1281, %v1344
        %v1346 = vpop.f32.mrb[0].mxu0
        %v1347 = vpop.f32.mrb[0].mxu0
        %v1348 = vpop.f32.mrb[0].mxu0
        %1349 = vdwg.mxu0
        %v1350 = vadd.f32 %v1345, %v1197
        %v1351 = vsel %vm554, %v1350, 0.0
        %1352 = vadd.xlane.f32.xlu0 %v1351
        %v1353 = vpop.xlane.xlu0 %1352
        %v1354 = vmul.f32 %v1353, %v1169
        %v1355 = vsub.f32 %v1350, %v1354
        %v1356 = vmul.f32 %v1355, %v1355
        %v1357 = vsel %vm554, %v1356, 0.0
        %1358 = vadd.xlane.f32.xlu0 %v1357
        %v1359 = vpop.xlane.xlu0 %1358
        %v1360 = vmul.f32 %v1359, 0.032258064
        %v1361 = vrsqrt.pop %v1360
        %v1362 = vmul.f32 %v1360, %v1361
        %vm1363 = vcmp.eq.f32.partialorder %v1360, inf
        %v1364 = vsel %vm1363, %v1360, %v1362
        %vm1365 = vcmp.eq.f32.partialorder %v1360, 0.0
        %v1366 = vand.u32 %v1360, 2147483648
        %v1367 = vsel %vm1365, %v1366, %v1364
        %v1368 = vadd.f32 %v1367, 1e-06
        %v1369 = vrcp.pop %v1368
        %v1370 = vmul.f32 1.0, %v1369
        %v1371 = vmul.f32 %v1355, %v1370
        %v1372 = vlaneseq
        %v1373 = vshrl.u32 %v1372, 7
        %v1374 = vsub.s32 4, %v1373
        %v1375 = vrot.slane %v530, %v1374
        %v1376 = vmul.f32 %v1375, %v1371
        %v1377 = vlaneseq
        %v1378 = vshrl.u32 %v1377, 7
        %v1379 = vsub.s32 5, %v1378
        %v1380 = vrot.slane %v530, %v1379
        %v1381 = vadd.f32 %v1376, %v1380
        %1382 = vst.msk [vmem:[%s489] sm:$0xff] %vm554, %v1381
        %s1383 = sand.u32 %s283, 1
        %s1384 = scalar_lea.sflag [#allocation6], %s1383
        %s1385 = sand.u32 %s283, 1
        %s1386 = smul.addr %s1385, 8
        %s1387 = scalar_lea.vmem [#allocation9], %s1386
        // Predicated region
        $region69: #{tpu_custom_call.1} parent=55 // pred_check
          %p1388 = pneg %p293
        $region70: #{tpu_custom_call.1} parent=55 // pred_check_branch
          %1390 = sbr.rel (%p1388) target = $region72
        $region71: #{tpu_custom_call.1} parent=55 // pred_region
          %s1392 = ssub.s32 128, 128
          %1393 = vsyncadd %s1384, %s1392
          %s1394 = smul.addr %s33, 128
          %s1395 = scalar_lea.hbm %s9, %s1394
          %s1397 = sshll.u32 %s1387, 4
          %s1398 = int_to_ptr.vmem [resolvable:$true] %s1397
          %1400 = dma.vmem_to_hbm [thread:$0]  %s1398, 128, %s1395, %s1384
        $region72: #{tpu_custom_call.1} parent=55 // pred_fallthru
          _
      $region56: #{tpu_custom_call.1} parent=5 // pred_fallthru
        _
      %p1401 = scmp.le.s32.totalorder 2, %s24
      // Predicated region
      $region73: #{tpu_custom_call.1} parent=5 // pred_check
        %p1402 = pneg %p1401
      $region74: #{tpu_custom_call.1} parent=5 // pred_check_branch
        %1404 = sbr.rel (%p1402) target = $region76
      $region75: #{tpu_custom_call.1} parent=5 // pred_region
        %s1405 = ssub.s32 %s24, 2
        // Predicated region
        $region77: #{tpu_custom_call.1} parent=75 // pred_check
          %p1406 = pneg %p299
        $region78: #{tpu_custom_call.1} parent=75 // pred_check_branch
          %1408 = sbr.rel (%p1406) target = $region80
        $region79: #{tpu_custom_call.1} parent=75 // pred_region
          %s1409 = sand.u32 %s284, 1
          %s1410 = scalar_lea.sflag [#allocation6], %s1409
          %s1411 = sand.u32 %s284, 1
          %s1412 = smul.addr %s1411, 8
          %s1413 = scalar_lea.vmem [#allocation9], %s1412
          %1414 = dma.done %s1410, 128
        $region80: #{tpu_custom_call.1} parent=75 // pred_fallthru
          _
      $region76: #{tpu_custom_call.1} parent=5 // pred_fallthru
        _
    $region6: #{tpu_custom_call.1} parent=1 // loop_footer
      %s28 = sadd.s32 1, %s24
    $region7: #{tpu_custom_call.1} parent=1 // loop_footer_branch
      %23 = sbr.rel target = $region3
    $region8: #{tpu_custom_call.1} parent=1 // loop_exit
      _
    %1415 = vsyncpa [#allocation5], 1
    %s1416 = scalar_lea.sflag [#allocation5], 1
    %1417 = vsyncpa %s1416, 1
    %1418 = vsyncpa [#allocation8], 1
    %s1419 = scalar_lea.sflag [#allocation8], 1
    %1420 = vsyncpa %s1419, 1
    %1421 = vsyncpa [#allocation6], 1
    %s1422 = scalar_lea.sflag [#allocation6], 1
    %1423 = vsyncpa %s1422, 1

</llo_original>
